<compile_context>
chip_gen: v7x
topology: tpu7x:2x2x1
jax: 0.10.0
libtpu: 0.0.40
codegen_flags: <defaults>
</compile_context>

<pallas_src>
import math

import jax
import jax.numpy as jnp
from jax.experimental import pallas as pl
from jax.experimental.pallas import tpu as pltpu

_MAX_TILE_ROWS = 4096                   # cap on packed rows per grid step
_MAX_PACKED_WIDTH = 512                 # cap on w = g*d for lane packing
_TILE_VMEM_BUDGET = 20 * 1024 * 1024    # tiles + f32 intermediates budget
_VMEM_LIMIT = 40 * 1024 * 1024


def _num_parallel_cores():
    """2 on dual-TensorCore chips (v7x), 1 on single-core v5e/v6e."""
    try:
        kind = jax.devices()[0].device_kind.lower()
    except Exception:
        return 1
    return 2 if "v7" in kind else 1


def _uncertainty_loss_kernel(unc_ref, pred_ref, gt_ref, seg_ref, out_ref, acc_ref):
    k = pl.program_id(1)
    nk = pl.num_programs(1)

    @pl.when(k == 0)
    def _():
        acc_ref[...] = jnp.zeros_like(acc_ref)

    pred = pred_ref[...].astype(jnp.float32)      # (tm, w)
    gt = gt_ref[...].astype(jnp.float32)          # (tm, w)
    diff = pred - gt
    seg = seg_ref[...]                            # (w, g) block-diagonal 0/1

    dn = (((1,), (0,)), ((), ()))
    hi = jax.lax.Precision.HIGHEST
    sd = jax.lax.dot_general(diff * diff, seg, dn, precision=hi,
                             preferred_element_type=jnp.float32)   # (tm, g)
    sp = jax.lax.dot_general(pred * pred, seg, dn, precision=hi,
                             preferred_element_type=jnp.float32)   # (tm, g)
    sg = jax.lax.dot_general(gt * gt, seg, dn, precision=hi,
                             preferred_element_type=jnp.float32)   # (tm, g)

    # Exact division kept on purpose: pad rows (pred=1, gt=0, unc=1) then give
    # prob == 1.0 exactly and contribute exactly 0, so no tail mask is needed.
    prob = jnp.sqrt(sd) / (jnp.sqrt(sp) + jnp.sqrt(sg))             # (tm, g)
    err = jnp.abs(unc_ref[...].astype(jnp.float32) - prob)          # (tm, g)

    # Lane-dense accumulation: one sublane reduce per step, tiny (1, g) RMW.
    acc_ref[...] += jnp.sum(err, axis=0, keepdims=True)

    @pl.when(k == nk - 1)
    def _():
        # Single cross-lane reduce per core, only on the final step.
        out_ref[...] = jnp.full(out_ref.shape, jnp.sum(acc_ref[...]), jnp.float32)


def uncertainty_loss(uncertainty_probs, predictions, ground_truth):
    """Pallas implementation of UncertaintyLoss.forward. Returns a scalar f32."""
    assert ground_truth.shape == predictions.shape
    d = predictions.shape[-1]
    lead = predictions.shape[:-1]
    m = math.prod(lead)
    assert uncertainty_probs.shape == lead

    pred2 = predictions.reshape(m, d)
    gt2 = ground_truth.reshape(m, d)
    unc1 = uncertainty_probs.reshape(m)

    # Lane packing: g original rows per packed row, w = g*d = lcm(d, 128).
    if d < 128:
        g = 128 // math.gcd(d, 128)
        if g * d > _MAX_PACKED_WIDTH:
            g = 1
    else:
        g = 1
    w = g * d

    itemsize = jnp.dtype(predictions.dtype).itemsize
    unc_itemsize = jnp.dtype(uncertainty_probs.dtype).itemsize
    lanes_unc = 128  # the (tm, g) unc tile pads its lane dim to 128 in VMEM
    per_row_bytes = (
        2 * 2 * w * itemsize              # pred + gt tiles, double-buffered
        + 2 * lanes_unc * unc_itemsize    # unc tile (lane-padded), double-buffered
        + 6 * w * 4                       # f32 intermediates (upcasts/diff/squares)
        + 8 * lanes_unc * 4               # (tm, g) sums / prob / err temporaries
    )
    tile_cap = _TILE_VMEM_BUDGET // per_row_bytes
    tile_cap = max(8, min(_MAX_TILE_ROWS, (tile_cap // 8) * 8))

    n_par = _num_parallel_cores()
    rows = -(-m // g)                                       # packed rows needed
    tm = min(tile_cap, ((-(-rows // n_par) + 7) // 8) * 8)
    k_steps = -(-rows // (n_par * tm))
    rows_pad = n_par * k_steps * tm
    m_pad = rows_pad * g

    if m_pad > m:
        # pred pad = 1, gt pad = 0, unc pad = 1  =>  prob == 1 exactly for pad
        # rows and |unc - prob| == 0, so pad rows contribute nothing (no mask).
        pred2 = jnp.pad(pred2, ((0, m_pad - m), (0, 0)), constant_values=1.0)
        gt2 = jnp.pad(gt2, ((0, m_pad - m), (0, 0)))
        unc1 = jnp.pad(unc1, (0, m_pad - m), constant_values=1.0)

    pred_p = pred2.reshape(rows_pad, w)
    gt_p = gt2.reshape(rows_pad, w)
    unc_p = unc1.reshape(rows_pad, g)

    # Block-diagonal segmented-sum matrix: lane l belongs to segment l // d.
    seg_mat = (jnp.arange(w, dtype=jnp.int32)[:, None] // d
               == jnp.arange(g, dtype=jnp.int32)[None, :]).astype(jnp.float32)

    out = pl.pallas_call(
        _uncertainty_loss_kernel,
        out_shape=jax.ShapeDtypeStruct((n_par * 8, 128), jnp.float32),
        grid_spec=pltpu.PrefetchScalarGridSpec(
            num_scalar_prefetch=0,
            grid=(n_par, k_steps),
            in_specs=[
                pl.BlockSpec((tm, g), lambda p, k: (p * k_steps + k, 0)),
                pl.BlockSpec((tm, w), lambda p, k: (p * k_steps + k, 0)),
                pl.BlockSpec((tm, w), lambda p, k: (p * k_steps + k, 0)),
                pl.BlockSpec((w, g), lambda p, k: (0, 0)),   # constant, fetched once
            ],
            out_specs=pl.BlockSpec((8, 128), lambda p, k: (p, 0)),
            scratch_shapes=[pltpu.VMEM((1, g), jnp.float32)],
        ),
        compiler_params=pltpu.CompilerParams(
            dimension_semantics=("parallel", "arbitrary"),
            vmem_limit_bytes=_VMEM_LIMIT,
        ),
        cost_estimate=pl.CostEstimate(
            flops=10 * m_pad * d,
            transcendentals=3 * m_pad,
            bytes_accessed=(2 * m_pad * d * itemsize + m_pad * unc_itemsize
                            + n_par * 8 * 128 * 4),
        ),
    )(unc_p, pred_p, gt_p, seg_mat)

    partials = out.reshape(n_par, 8, 128)[:, 0, 0]
    return jnp.sum(partials) / jnp.float32(m)


def _reference(uncertainty_probs, predictions, ground_truth):
    diff = predictions - ground_truth
    n_diff = jnp.linalg.norm(diff, axis=-1)
    n_pred = jnp.linalg.norm(predictions, axis=-1)
    n_gt = jnp.linalg.norm(ground_truth, axis=-1)
    prob = n_diff / (n_pred + n_gt)
    return jnp.mean(jnp.abs(uncertainty_probs - prob))


if __name__ == "__main__":
    key = jax.random.PRNGKey(0)
    keys = jax.random.split(key, 9)

    # Case 1: packed path, d | 128  (g = 4, w = 128).
    B, N, D = 2, 8, 32
    pred1 = jax.random.normal(keys[0], (B, N, D), dtype=jnp.float32)
    gt1 = jax.random.normal(keys[1], (B, N, D), dtype=jnp.float32)
    unc1 = jax.random.uniform(keys[2], (B, N), dtype=jnp.float32)
    loss1 = jax.block_until_ready(uncertainty_loss(unc1, pred1, gt1))
    ref1 = _reference(unc1, pred1, gt1)
    assert jnp.allclose(loss1, ref1, atol=1e-5, rtol=1e-5), (loss1, ref1)

    # Case 2: generalized packing, d = 48 (g = 8, w = 384), odd row count (pad).
    B2, N2, D2 = 3, 5, 48
    pred2 = jax.random.normal(keys[3], (B2, N2, D2), dtype=jnp.float32)
    gt2 = jax.random.normal(keys[4], (B2, N2, D2), dtype=jnp.float32)
    unc2 = jax.random.uniform(keys[5], (B2, N2), dtype=jnp.float32)
    loss2 = jax.block_until_ready(uncertainty_loss(unc2, pred2, gt2))
    ref2 = _reference(unc2, pred2, gt2)
    assert jnp.allclose(loss2, ref2, atol=1e-5, rtol=1e-5), (loss2, ref2)

    # Case 3: large-D path, g = 1, full-width non-128-multiple block (pad).
    B3, N3, D3 = 2, 6, 160
    pred3 = jax.random.normal(keys[6], (B3, N3, D3), dtype=jnp.float32)
    gt3 = jax.random.normal(keys[7], (B3, N3, D3), dtype=jnp.float32)
    unc3 = jax.random.uniform(keys[8], (B3, N3), dtype=jnp.float32)
    loss3 = jax.block_until_ready(uncertainty_loss(unc3, pred3, gt3))
    ref3 = _reference(unc3, pred3, gt3)
    assert jnp.allclose(loss3, ref3, atol=1e-5, rtol=1e-5), (loss3, ref3)

    print("KERNEL_OK")
</pallas_src>

<mosaic_0001>
module attributes {stable_mosaic.version = 11 : i64} {
  func.func @_uncertainty_loss_kernel(%arg0: i32, %arg1: i32, %arg2: memref<8x4xf32, #tpu.memory_space<vmem>>, %arg3: memref<8x128xf32, #tpu.memory_space<vmem>>, %arg4: memref<8x128xf32, #tpu.memory_space<vmem>>, %arg5: memref<128x4xf32, #tpu.memory_space<vmem>>, %arg6: memref<8x128xf32, #tpu.memory_space<vmem>>, %arg7: memref<1x4xf32, #tpu.memory_space<vmem>>) attributes {dimension_semantics = [#tpu.dimension_semantics<parallel>, #tpu.dimension_semantics<arbitrary>], iteration_bounds = array<i64: 1, 1>, scalar_prefetch = 0 : i64, scratch_operands = 1 : i64, tpu.core_type = #tpu.core_type<tc>, window_params = [{transform_indices = @transform_0, window_bounds = array<i64: 8, 4>}, {transform_indices = @transform_1, window_bounds = array<i64: 8, 128>}, {transform_indices = @transform_2, window_bounds = array<i64: 8, 128>}, {pipeline_mode = #tpu.pipeline_mode<synchronous>, transform_indices = @transform_3, window_bounds = array<i64: 128, 4>}, {transform_indices = @transform_4, window_bounds = array<i64: 8, 128>}]} {
    %c0_i32 = arith.constant 0 : i32
    %0 = arith.cmpi eq, %arg1, %c0_i32 : i32
    %1 = arith.extui %0 : i1 to i32
    %c0_i32_0 = arith.constant 0 : i32
    %2 = arith.cmpi ne, %1, %c0_i32_0 : i32
    scf.if %2 {
      %cst_17 = arith.constant 0.000000e+00 : f32
      %29 = vector.broadcast %cst_17 : f32 to vector<1x4xf32>
      %c0_18 = arith.constant 0 : index
      %c0_19 = arith.constant 0 : index
      %30 = vector.load %arg7[%c0_18, %c0_19] : memref<1x4xf32, #tpu.memory_space<vmem>>, vector<1x4xf32>
      tpu.vector_store %arg7[%c0_18, %c0_19], %29 {strides = array<i32>} : memref<1x4xf32, #tpu.memory_space<vmem>>, vector<1x4xf32>,
    } else {
    }
    %c0 = arith.constant 0 : index
    %c0_1 = arith.constant 0 : index
    %3 = vector.load %arg3[%c0, %c0_1] : memref<8x128xf32, #tpu.memory_space<vmem>>, vector<8x128xf32>
    %c0_2 = arith.constant 0 : index
    %c0_3 = arith.constant 0 : index
    %4 = vector.load %arg4[%c0_2, %c0_3] : memref<8x128xf32, #tpu.memory_space<vmem>>, vector<8x128xf32>
    %5 = arith.subf %3, %4 : vector<8x128xf32>
    %c0_4 = arith.constant 0 : index
    %c0_5 = arith.constant 0 : index
    %6 = vector.load %arg5[%c0_4, %c0_5] : memref<128x4xf32, #tpu.memory_space<vmem>>, vector<128x4xf32>
    %7 = arith.mulf %5, %5 : vector<8x128xf32>
    %cst = arith.constant dense<0.000000e+00> : vector<8x4xf32>
    %8 = tpu.matmul %7, %6, %cst {dimension_numbers = #tpu.dot_dimension_numbers<[1], [0], [0], [1], [0, 0, 1, 1], [], []>, precision = #tpu.contract_precision<fp32>} : vector<8x128xf32>, vector<128x4xf32>, vector<8x4xf32> -> vector<8x4xf32>
    %9 = arith.mulf %3, %3 : vector<8x128xf32>
    %cst_6 = arith.constant dense<0.000000e+00> : vector<8x4xf32>
    %10 = tpu.matmul %9, %6, %cst_6 {dimension_numbers = #tpu.dot_dimension_numbers<[1], [0], [0], [1], [0, 0, 1, 1], [], []>, precision = #tpu.contract_precision<fp32>} : vector<8x128xf32>, vector<128x4xf32>, vector<8x4xf32> -> vector<8x4xf32>
    %11 = arith.mulf %4, %4 : vector<8x128xf32>
    %cst_7 = arith.constant dense<0.000000e+00> : vector<8x4xf32>
    %12 = tpu.matmul %11, %6, %cst_7 {dimension_numbers = #tpu.dot_dimension_numbers<[1], [0], [0], [1], [0, 0, 1, 1], [], []>, precision = #tpu.contract_precision<fp32>} : vector<8x128xf32>, vector<128x4xf32>, vector<8x4xf32> -> vector<8x4xf32>
    %13 = math.sqrt %8 : vector<8x4xf32>
    %14 = math.sqrt %10 : vector<8x4xf32>
    %15 = math.sqrt %12 : vector<8x4xf32>
    %16 = arith.addf %14, %15 : vector<8x4xf32>
    %17 = arith.divf %13, %16 : vector<8x4xf32>
    %c0_8 = arith.constant 0 : index
    %c0_9 = arith.constant 0 : index
    %18 = vector.load %arg2[%c0_8, %c0_9] : memref<8x4xf32, #tpu.memory_space<vmem>>, vector<8x4xf32>
    %19 = arith.subf %18, %17 : vector<8x4xf32>
    %20 = math.absf %19 : vector<8x4xf32>
    %c0_10 = arith.constant 0 : index
    %c0_11 = arith.constant 0 : index
    %21 = vector.load %arg7[%c0_10, %c0_11] : memref<1x4xf32, #tpu.memory_space<vmem>>, vector<1x4xf32>
    %cst_12 = arith.constant dense<0.000000e+00> : vector<4xf32>
    %22 = vector.multi_reduction <add>, %20, %cst_12 [0] : vector<8x4xf32> to vector<4xf32>
    %23 = vector.shape_cast %22 : vector<4xf32> to vector<1x4xf32>
    %24 = arith.addf %21, %23 : vector<1x4xf32>
    %c0_13 = arith.constant 0 : index
    %c0_14 = arith.constant 0 : index
    %25 = vector.load %arg7[%c0_13, %c0_14] : memref<1x4xf32, #tpu.memory_space<vmem>>, vector<1x4xf32>
    tpu.vector_store %arg7[%c0_13, %c0_14], %24 {strides = array<i32>} : memref<1x4xf32, #tpu.memory_space<vmem>>, vector<1x4xf32>,
    %c0_i32_15 = arith.constant 0 : i32
    %26 = arith.cmpi eq, %arg1, %c0_i32_15 : i32
    %27 = arith.extui %26 : i1 to i32
    %c0_i32_16 = arith.constant 0 : i32
    %28 = arith.cmpi ne, %27, %c0_i32_16 : i32
    scf.if %28 {
      %c0_17 = arith.constant 0 : index
      %c0_18 = arith.constant 0 : index
      %29 = vector.load %arg7[%c0_17, %c0_18] : memref<1x4xf32, #tpu.memory_space<vmem>>, vector<1x4xf32>
      %30 = vector.shape_cast %29 : vector<1x4xf32> to vector<1x1x4xf32>
      %cst_19 = arith.constant dense<0.000000e+00> : vector<1xf32>
      %31 = vector.multi_reduction <add>, %30, %cst_19 [1, 2] : vector<1x1x4xf32> to vector<1xf32>
      %32 = vector.shape_cast %31 : vector<1xf32> to vector<1x1x1xf32>
      %33 = vector.extract %32[0, 0, 0] : f32 from vector<1x1x1xf32>
      %34 = vector.broadcast %33 : f32 to vector<8x128xf32>
      %c0_20 = arith.constant 0 : index
      %c0_21 = arith.constant 0 : index
      %35 = vector.load %arg6[%c0_20, %c0_21] : memref<8x128xf32, #tpu.memory_space<vmem>>, vector<8x128xf32>
      tpu.vector_store %arg6[%c0_20, %c0_21], %34 {strides = array<i32>} : memref<8x128xf32, #tpu.memory_space<vmem>>, vector<8x128xf32>,
    } else {
    }
    return
  }
  func.func @transform_0(%arg0: i32, %arg1: i32) -> (i32, i32) {
    %c1_i32 = arith.constant 1 : i32
    %0 = arith.muli %arg0, %c1_i32 : i32
    %1 = arith.addi %0, %arg1 : i32
    %c0_i32 = arith.constant 0 : i32
    %c0_i32_0 = arith.constant 0 : i32
    return %1, %c0_i32 : i32, i32
  }
  func.func @transform_1(%arg0: i32, %arg1: i32) -> (i32, i32) {
    %c1_i32 = arith.constant 1 : i32
    %0 = arith.muli %arg0, %c1_i32 : i32
    %1 = arith.addi %0, %arg1 : i32
    %c0_i32 = arith.constant 0 : i32
    %c0_i32_0 = arith.constant 0 : i32
    return %1, %c0_i32 : i32, i32
  }
  func.func @transform_2(%arg0: i32, %arg1: i32) -> (i32, i32) {
    %c1_i32 = arith.constant 1 : i32
    %0 = arith.muli %arg0, %c1_i32 : i32
    %1 = arith.addi %0, %arg1 : i32
    %c0_i32 = arith.constant 0 : i32
    %c0_i32_0 = arith.constant 0 : i32
    return %1, %c0_i32 : i32, i32
  }
  func.func @transform_3(%arg0: i32, %arg1: i32) -> (i32, i32) {
    %c0_i32 = arith.constant 0 : i32
    %c0_i32_0 = arith.constant 0 : i32
    %c0_i32_1 = arith.constant 0 : i32
    return %c0_i32, %c0_i32_0 : i32, i32
  }
  func.func @transform_4(%arg0: i32, %arg1: i32) -> (i32, i32) {
    %c0_i32 = arith.constant 0 : i32
    %c0_i32_0 = arith.constant 0 : i32
    return %arg0, %c0_i32 : i32, i32
  }
}

</mosaic_0001>

<llo_original>
// kernel: tpu_custom_call.1
$region0: #{tpu_custom_call.1}
  #allocation0 [shape = 'u32[]', space=smem, size = 0x4, offset = 0x4, fixed_abs, tag = 'smem constant byte address 0x4 - core index']
  #allocation1 [shape = 'u32[144,128]{1,0:T(1,128)}', space=vmem, size = 0x12000, scoped, tag = 'internal scratch']
  #allocation2 [shape = 'f32[1,4]{1,0:T(1,128)}', space=vmem, size = 0x200, scoped, tag = 'scratch operand']
  %s0 = inlined_call_operand.vmem [shape: f32[8,4], index: 0, kind: input, shape index: {}]
  %s1 = inlined_call_operand.vmem [shape: f32[8,128], index: 1, kind: input, shape index: {}]
  %s2 = inlined_call_operand.vmem [shape: f32[8,128], index: 2, kind: input, shape index: {}]
  %s3 = inlined_call_operand.vmem [shape: f32[128,4], index: 3, kind: input, shape index: {}]
  %s4 = inlined_call_operand.hbm [shape: f32[8,128], index: 4, kind: output, shape index: {}]
  %s5 = sld [smem:[#allocation0]]
  $region34: #{tpu_custom_call.1} parent=0
    _
  %s7 = ssub.s32 1, %s5
  %s8 = scalar_select 0, %s7, %s5
  $region1: #{tpu_custom_call.1} parent=0
    #allocation3 [shape = 'u8[4096]{0}', space=vmem, size = 0x1000, scoped, tag = 'output window, operand 0, single buffered']
    #allocation4 [shape = 's32[1]{0}', space=sflag, size = 0x4, scoped, tag = 'scoped memory for tpu_custom_call.1']
    %9 = vsyncpa [#allocation4], 0
    // Predicated region
    $region2: #{tpu_custom_call.1} parent=1 // pred_check
      _
    $region3: #{tpu_custom_call.1} parent=1 // pred_check_branch
      %11 = sbr.rel (0) target = $region5
    $region4: #{tpu_custom_call.1} parent=1 // pred_region
      %s12 = sadd.s32 0, 0
      %p13 = scmp.lt.s32.totalorder %s12, 0
      %s14 = scalar_select %p13, %s12, 0
      %s15 = smul.addr %s14, 8
      %s16 = scalar_lea.vmem %s0, %s15
      %s17 = sadd.s32 0, 0
    $region5: #{tpu_custom_call.1} parent=1 // pred_fallthru
      _
    // Predicated region
    $region6: #{tpu_custom_call.1} parent=1 // pred_check
      _
    $region7: #{tpu_custom_call.1} parent=1 // pred_check_branch
      %19 = sbr.rel (0) target = $region9
    $region8: #{tpu_custom_call.1} parent=1 // pred_region
      %s20 = sadd.s32 0, 0
      %p21 = scmp.lt.s32.totalorder %s20, 0
      %s22 = scalar_select %p21, %s20, 0
      %s23 = smul.addr %s22, 8
      %s24 = scalar_lea.vmem %s1, %s23
      %s25 = sadd.s32 0, 0
    $region9: #{tpu_custom_call.1} parent=1 // pred_fallthru
      _
    // Predicated region
    $region10: #{tpu_custom_call.1} parent=1 // pred_check
      _
    $region11: #{tpu_custom_call.1} parent=1 // pred_check_branch
      %27 = sbr.rel (0) target = $region13
    $region12: #{tpu_custom_call.1} parent=1 // pred_region
      %s28 = sadd.s32 0, 0
      %p29 = scmp.lt.s32.totalorder %s28, 0
      %s30 = scalar_select %p29, %s28, 0
      %s31 = smul.addr %s30, 8
      %s32 = scalar_lea.vmem %s2, %s31
      %s33 = sadd.s32 0, 0
    $region13: #{tpu_custom_call.1} parent=1 // pred_fallthru
      _
    // Predicated region
    $region14: #{tpu_custom_call.1} parent=1 // pred_check
      _
    $region15: #{tpu_custom_call.1} parent=1 // pred_check_branch
      %35 = sbr.rel (0) target = $region17
    $region16: #{tpu_custom_call.1} parent=1 // pred_region
      _
    $region17: #{tpu_custom_call.1} parent=1 // pred_fallthru
      _
    %s36 = sadd.s32 0, 0
    %p37 = scmp.lt.s32.totalorder %s36, 0
    %s38 = scalar_select %p37, %s36, 0
    %s39 = smul.addr %s38, 8
    %s40 = scalar_lea.vmem %s0, %s39
    %s41 = sadd.s32 0, 0
    %p42 = scmp.lt.s32.totalorder %s41, 0
    %s43 = scalar_select %p42, %s41, 0
    %s44 = smul.addr %s43, 8
    %s45 = scalar_lea.vmem %s1, %s44
    %s46 = sadd.s32 0, 0
    %p47 = scmp.lt.s32.totalorder %s46, 0
    %s48 = scalar_select %p47, %s46, 0
    %s49 = smul.addr %s48, 8
    %s50 = scalar_lea.vmem %s2, %s49
    %s51 = sadd.s32 0, 0
    %p52 = scmp.lt.s32.totalorder %s51, 0
    %s53 = scalar_select %p52, %s51, 0
    %s54 = smul.addr %s53, 8
    %s55 = scalar_lea.vmem %s0, %s54
    %s56 = sadd.s32 0, 0
    %s57 = sadd.s32 0, 0
    %p58 = scmp.lt.s32.totalorder %s57, 0
    %s59 = scalar_select %p58, %s57, 0
    %s60 = smul.addr %s59, 8
    %s61 = scalar_lea.vmem %s1, %s60
    %s62 = sadd.s32 0, 0
    %s63 = sadd.s32 0, 0
    %p64 = scmp.lt.s32.totalorder %s63, 0
    %s65 = scalar_select %p64, %s63, 0
    %s66 = smul.addr %s65, 8
    %s67 = scalar_lea.vmem %s2, %s66
    %s68 = sadd.s32 0, 0
    %p69 = scmp.eq.s32.totalorder 0, 0
    // Predicated region
    $region18: #{tpu_custom_call.1} parent=1 // pred_check
      %p70 = pneg %p69
    $region19: #{tpu_custom_call.1} parent=1 // pred_check_branch
      %72 = sbr.rel (%p70) target = $region21
    $region20: #{tpu_custom_call.1} parent=1 // pred_region
      %vm73 = vcmask 24576
      %74 = vst.msk [vmem:[#allocation2] sm:$0x1] %vm73, 0.0
    $region21: #{tpu_custom_call.1} parent=1 // pred_fallthru
      _
    %v75 = vld [vmem:[%s61] sm:$0xff]
    %v76 = vld [vmem:[%s67] sm:$0xff]
    %v77 = vsub.f32 %v75, %v76
    %v78 = vld [vmem:[%s3] sm:$0xff]
    %v79 = vld [vmem:[%s3 + $0x8] sm:$0xff]
    %v80 = vld [vmem:[%s3 + $0x10] sm:$0xff]
    %v81 = vld [vmem:[%s3 + $0x18] sm:$0xff]
    %v82 = vld [vmem:[%s3 + $0x20] sm:$0xff]
    %v83 = vld [vmem:[%s3 + $0x28] sm:$0xff]
    %v84 = vld [vmem:[%s3 + $0x30] sm:$0xff]
    %v85 = vld [vmem:[%s3 + $0x38] sm:$0xff]
    %v86 = vld [vmem:[%s3 + $0x40] sm:$0xff]
    %v87 = vld [vmem:[%s3 + $0x48] sm:$0xff]
    %v88 = vld [vmem:[%s3 + $0x50] sm:$0xff]
    %v89 = vld [vmem:[%s3 + $0x58] sm:$0xff]
    %v90 = vld [vmem:[%s3 + $0x60] sm:$0xff]
    %v91 = vld [vmem:[%s3 + $0x68] sm:$0xff]
    %v92 = vld [vmem:[%s3 + $0x70] sm:$0xff]
    %v93 = vld [vmem:[%s3 + $0x78] sm:$0xff]
    %v94 = vmul.f32 %v77, %v77
    %95 = vmatprep.subr.mxu0 0.0
    %v96 = vand.u32 %v78, 4294901760
    %97 = vmatpush1.msra.mxu0 %v96
    %98 = vmatprep.subr.mxu0 0.0
    %v99 = vand.u32 %v79, 4294901760
    %100 = vmatpush1.msra.mxu0 %v99
    %101 = vmatprep.subr.mxu0 0.0
    %v102 = vand.u32 %v80, 4294901760
    %103 = vmatpush1.msra.mxu0 %v102
    %104 = vmatprep.subr.mxu0 0.0
    %v105 = vand.u32 %v81, 4294901760
    %106 = vmatpush1.msra.mxu0 %v105
    %107 = vmatprep.subr.mxu0 0.0
    %v108 = vand.u32 %v82, 4294901760
    %109 = vmatpush1.msra.mxu0 %v108
    %110 = vmatprep.subr.mxu0 0.0
    %v111 = vand.u32 %v83, 4294901760
    %112 = vmatpush1.msra.mxu0 %v111
    %113 = vmatprep.subr.mxu0 0.0
    %v114 = vand.u32 %v84, 4294901760
    %115 = vmatpush1.msra.mxu0 %v114
    %116 = vmatprep.subr.mxu0 0.0
    %v117 = vand.u32 %v85, 4294901760
    %118 = vmatpush1.msra.mxu0 %v117
    %119 = vmatprep.subr.mxu0 0.0
    %v120 = vand.u32 %v86, 4294901760
    %121 = vmatpush1.msra.mxu0 %v120
    %122 = vmatprep.subr.mxu0 0.0
    %v123 = vand.u32 %v87, 4294901760
    %124 = vmatpush1.msra.mxu0 %v123
    %125 = vmatprep.subr.mxu0 0.0
    %v126 = vand.u32 %v88, 4294901760
    %127 = vmatpush1.msra.mxu0 %v126
    %128 = vmatprep.subr.mxu0 0.0
    %v129 = vand.u32 %v89, 4294901760
    %130 = vmatpush1.msra.mxu0 %v129
    %131 = vmatprep.subr.mxu0 0.0
    %v132 = vand.u32 %v90, 4294901760
    %133 = vmatpush1.msra.mxu0 %v132
    %134 = vmatprep.subr.mxu0 0.0
    %v135 = vand.u32 %v91, 4294901760
    %136 = vmatpush1.msra.mxu0 %v135
    %137 = vmatprep.subr.mxu0 0.0
    %v138 = vand.u32 %v92, 4294901760
    %139 = vmatpush1.msra.mxu0 %v138
    %140 = vmatprep.subr.mxu0 0.0
    %v141 = vand.u32 %v93, 4294901760
    %142 = vmatpush1.msra.mxu0 %v141
    %143 = vmatprep.subr.mxu0 0.0
    %144 = vmatpush1.msra.mxu0 0.0
    %145 = vmatprep.subr.mxu0 0.0
    %146 = vmatpush1.msra.mxu0 0.0
    %147 = vmatprep.subr.mxu0 0.0
    %148 = vmatpush1.msra.mxu0 0.0
    %149 = vmatprep.subr.mxu0 0.0
    %150 = vmatpush1.msra.mxu0 0.0
    %151 = vmatprep.subr.mxu0 0.0
    %152 = vmatpush1.msra.mxu0 0.0
    %153 = vmatprep.subr.mxu0 0.0
    %154 = vmatpush1.msra.mxu0 0.0
    %155 = vmatprep.subr.mxu0 0.0
    %156 = vmatpush1.msra.mxu0 0.0
    %157 = vmatprep.subr.mxu0 0.0
    %158 = vmatpush1.msra.mxu0 0.0
    %159 = vmatprep.subr.mxu0 0.0
    %160 = vmatpush1.msra.mxu0 0.0
    %161 = vmatprep.subr.mxu0 0.0
    %162 = vmatpush1.msra.mxu0 0.0
    %163 = vmatprep.subr.mxu0 0.0
    %164 = vmatpush1.msra.mxu0 0.0
    %165 = vmatprep.subr.mxu0 0.0
    %166 = vmatpush1.msra.mxu0 0.0
    %167 = vmatprep.subr.mxu0 0.0
    %168 = vmatpush1.msra.mxu0 0.0
    %169 = vmatprep.subr.mxu0 0.0
    %170 = vmatpush1.msra.mxu0 0.0
    %171 = vmatprep.subr.mxu0 0.0
    %172 = vmatpush1.msra.mxu0 0.0
    %173 = vmatprep.subr.mxu0 0.0
    %174 = vmatpush1.msra.mxu0 0.0
    %175 = vmatprep.mubr.f32.mxu0 0.0
    %v176 = vand.u32 %v94, 4294901760
    %v177 = vsub.f32 %v94, %v176
    %v178 = vand.u32 %v177, 4294901760
    %v179 = vsub.f32 %v177, %v178
    %v180 = vand.u32 %v179, 4294901760
    %181 = vmatmul.mubr.f32.gmra.mrb[0].mxu0 %v180
    %v182 = vpop.f32.mrb[0].mxu0
    %v183 = vadd.f32 0.0, %v182
    %v184 = vpop.f32.mrb[0].mxu0
    %185 = vdwg.mxu0
    %186 = vmatprep.subr.mxu0 0.0
    %v187 = vand.u32 %v78, 4294901760
    %v188 = vsub.f32 %v78, %v187
    %v189 = vand.u32 %v188, 4294901760
    %v190 = vsub.f32 %v188, %v189
    %v191 = vand.u32 %v190, 4294901760
    %192 = vmatpush1.msra.mxu0 %v191
    %193 = vmatprep.subr.mxu0 0.0
    %v194 = vand.u32 %v79, 4294901760
    %v195 = vsub.f32 %v79, %v194
    %v196 = vand.u32 %v195, 4294901760
    %v197 = vsub.f32 %v195, %v196
    %v198 = vand.u32 %v197, 4294901760
    %199 = vmatpush1.msra.mxu0 %v198
    %200 = vmatprep.subr.mxu0 0.0
    %v201 = vand.u32 %v80, 4294901760
    %v202 = vsub.f32 %v80, %v201
    %v203 = vand.u32 %v202, 4294901760
    %v204 = vsub.f32 %v202, %v203
    %v205 = vand.u32 %v204, 4294901760
    %206 = vmatpush1.msra.mxu0 %v205
    %207 = vmatprep.subr.mxu0 0.0
    %v208 = vand.u32 %v81, 4294901760
    %v209 = vsub.f32 %v81, %v208
    %v210 = vand.u32 %v209, 4294901760
    %v211 = vsub.f32 %v209, %v210
    %v212 = vand.u32 %v211, 4294901760
    %213 = vmatpush1.msra.mxu0 %v212
    %214 = vmatprep.subr.mxu0 0.0
    %v215 = vand.u32 %v82, 4294901760
    %v216 = vsub.f32 %v82, %v215
    %v217 = vand.u32 %v216, 4294901760
    %v218 = vsub.f32 %v216, %v217
    %v219 = vand.u32 %v218, 4294901760
    %220 = vmatpush1.msra.mxu0 %v219
    %221 = vmatprep.subr.mxu0 0.0
    %v222 = vand.u32 %v83, 4294901760
    %v223 = vsub.f32 %v83, %v222
    %v224 = vand.u32 %v223, 4294901760
    %v225 = vsub.f32 %v223, %v224
    %v226 = vand.u32 %v225, 4294901760
    %227 = vmatpush1.msra.mxu0 %v226
    %228 = vmatprep.subr.mxu0 0.0
    %v229 = vand.u32 %v84, 4294901760
    %v230 = vsub.f32 %v84, %v229
    %v231 = vand.u32 %v230, 4294901760
    %v232 = vsub.f32 %v230, %v231
    %v233 = vand.u32 %v232, 4294901760
    %234 = vmatpush1.msra.mxu0 %v233
    %235 = vmatprep.subr.mxu0 0.0
    %v236 = vand.u32 %v85, 4294901760
    %v237 = vsub.f32 %v85, %v236
    %v238 = vand.u32 %v237, 4294901760
    %v239 = vsub.f32 %v237, %v238
    %v240 = vand.u32 %v239, 4294901760
    %241 = vmatpush1.msra.mxu0 %v240
    %242 = vmatprep.subr.mxu0 0.0
    %v243 = vand.u32 %v86, 4294901760
    %v244 = vsub.f32 %v86, %v243
    %v245 = vand.u32 %v244, 4294901760
    %v246 = vsub.f32 %v244, %v245
    %v247 = vand.u32 %v246, 4294901760
    %248 = vmatpush1.msra.mxu0 %v247
    %249 = vmatprep.subr.mxu0 0.0
    %v250 = vand.u32 %v87, 4294901760
    %v251 = vsub.f32 %v87, %v250
    %v252 = vand.u32 %v251, 4294901760
    %v253 = vsub.f32 %v251, %v252
    %v254 = vand.u32 %v253, 4294901760
    %255 = vmatpush1.msra.mxu0 %v254
    %256 = vmatprep.subr.mxu0 0.0
    %v257 = vand.u32 %v88, 4294901760
    %v258 = vsub.f32 %v88, %v257
    %v259 = vand.u32 %v258, 4294901760
    %v260 = vsub.f32 %v258, %v259
    %v261 = vand.u32 %v260, 4294901760
    %262 = vmatpush1.msra.mxu0 %v261
    %263 = vmatprep.subr.mxu0 0.0
    %v264 = vand.u32 %v89, 4294901760
    %v265 = vsub.f32 %v89, %v264
    %v266 = vand.u32 %v265, 4294901760
    %v267 = vsub.f32 %v265, %v266
    %v268 = vand.u32 %v267, 4294901760
    %269 = vmatpush1.msra.mxu0 %v268
    %270 = vmatprep.subr.mxu0 0.0
    %v271 = vand.u32 %v90, 4294901760
    %v272 = vsub.f32 %v90, %v271
    %v273 = vand.u32 %v272, 4294901760
    %v274 = vsub.f32 %v272, %v273
    %v275 = vand.u32 %v274, 4294901760
    %276 = vmatpush1.msra.mxu0 %v275
    %277 = vmatprep.subr.mxu0 0.0
    %v278 = vand.u32 %v91, 4294901760
    %v279 = vsub.f32 %v91, %v278
    %v280 = vand.u32 %v279, 4294901760
    %v281 = vsub.f32 %v279, %v280
    %v282 = vand.u32 %v281, 4294901760
    %283 = vmatpush1.msra.mxu0 %v282
    %284 = vmatprep.subr.mxu0 0.0
    %v285 = vand.u32 %v92, 4294901760
    %v286 = vsub.f32 %v92, %v285
    %v287 = vand.u32 %v286, 4294901760
    %v288 = vsub.f32 %v286, %v287
    %v289 = vand.u32 %v288, 4294901760
    %290 = vmatpush1.msra.mxu0 %v289
    %291 = vmatprep.subr.mxu0 0.0
    %v292 = vand.u32 %v93, 4294901760
    %v293 = vsub.f32 %v93, %v292
    %v294 = vand.u32 %v293, 4294901760
    %v295 = vsub.f32 %v293, %v294
    %v296 = vand.u32 %v295, 4294901760
    %297 = vmatpush1.msra.mxu0 %v296
    %298 = vmatprep.subr.mxu0 0.0
    %299 = vmatpush1.msra.mxu0 0.0
    %300 = vmatprep.subr.mxu0 0.0
    %301 = vmatpush1.msra.mxu0 0.0
    %302 = vmatprep.subr.mxu0 0.0
    %303 = vmatpush1.msra.mxu0 0.0
    %304 = vmatprep.subr.mxu0 0.0
    %305 = vmatpush1.msra.mxu0 0.0
    %306 = vmatprep.subr.mxu0 0.0
    %307 = vmatpush1.msra.mxu0 0.0
    %308 = vmatprep.subr.mxu0 0.0
    %309 = vmatpush1.msra.mxu0 0.0
    %310 = vmatprep.subr.mxu0 0.0
    %311 = vmatpush1.msra.mxu0 0.0
    %312 = vmatprep.subr.mxu0 0.0
    %313 = vmatpush1.msra.mxu0 0.0
    %314 = vmatprep.subr.mxu0 0.0
    %315 = vmatpush1.msra.mxu0 0.0
    %316 = vmatprep.subr.mxu0 0.0
    %317 = vmatpush1.msra.mxu0 0.0
    %318 = vmatprep.subr.mxu0 0.0
    %319 = vmatpush1.msra.mxu0 0.0
    %320 = vmatprep.subr.mxu0 0.0
    %321 = vmatpush1.msra.mxu0 0.0
    %322 = vmatprep.subr.mxu0 0.0
    %323 = vmatpush1.msra.mxu0 0.0
    %324 = vmatprep.subr.mxu0 0.0
    %325 = vmatpush1.msra.mxu0 0.0
    %326 = vmatprep.subr.mxu0 0.0
    %327 = vmatpush1.msra.mxu0 0.0
    %328 = vmatprep.subr.mxu0 0.0
    %329 = vmatpush1.msra.mxu0 0.0
    %330 = vmatprep.mubr.f32.mxu0 0.0
    %v331 = vand.u32 %v94, 4294901760
    %332 = vmatmul.mubr.f32.gmra.mrb[0].mxu0 %v331
    %v333 = vpop.f32.mrb[0].mxu0
    %v334 = vadd.f32 %v183, %v333
    %v335 = vpop.f32.mrb[0].mxu0
    %336 = vdwg.mxu0
    %337 = vmatprep.subr.mxu0 0.0
    %v338 = vand.u32 %v78, 4294901760
    %v339 = vsub.f32 %v78, %v338
    %340 = vmatpush1.msra.mxu0 %v339
    %341 = vmatprep.subr.mxu0 0.0
    %v342 = vand.u32 %v79, 4294901760
    %v343 = vsub.f32 %v79, %v342
    %344 = vmatpush1.msra.mxu0 %v343
    %345 = vmatprep.subr.mxu0 0.0
    %v346 = vand.u32 %v80, 4294901760
    %v347 = vsub.f32 %v80, %v346
    %348 = vmatpush1.msra.mxu0 %v347
    %349 = vmatprep.subr.mxu0 0.0
    %v350 = vand.u32 %v81, 4294901760
    %v351 = vsub.f32 %v81, %v350
    %352 = vmatpush1.msra.mxu0 %v351
    %353 = vmatprep.subr.mxu0 0.0
    %v354 = vand.u32 %v82, 4294901760
    %v355 = vsub.f32 %v82, %v354
    %356 = vmatpush1.msra.mxu0 %v355
    %357 = vmatprep.subr.mxu0 0.0
    %v358 = vand.u32 %v83, 4294901760
    %v359 = vsub.f32 %v83, %v358
    %360 = vmatpush1.msra.mxu0 %v359
    %361 = vmatprep.subr.mxu0 0.0
    %v362 = vand.u32 %v84, 4294901760
    %v363 = vsub.f32 %v84, %v362
    %364 = vmatpush1.msra.mxu0 %v363
    %365 = vmatprep.subr.mxu0 0.0
    %v366 = vand.u32 %v85, 4294901760
    %v367 = vsub.f32 %v85, %v366
    %368 = vmatpush1.msra.mxu0 %v367
    %369 = vmatprep.subr.mxu0 0.0
    %v370 = vand.u32 %v86, 4294901760
    %v371 = vsub.f32 %v86, %v370
    %372 = vmatpush1.msra.mxu0 %v371
    %373 = vmatprep.subr.mxu0 0.0
    %v374 = vand.u32 %v87, 4294901760
    %v375 = vsub.f32 %v87, %v374
    %376 = vmatpush1.msra.mxu0 %v375
    %377 = vmatprep.subr.mxu0 0.0
    %v378 = vand.u32 %v88, 4294901760
    %v379 = vsub.f32 %v88, %v378
    %380 = vmatpush1.msra.mxu0 %v379
    %381 = vmatprep.subr.mxu0 0.0
    %v382 = vand.u32 %v89, 4294901760
    %v383 = vsub.f32 %v89, %v382
    %384 = vmatpush1.msra.mxu0 %v383
    %385 = vmatprep.subr.mxu0 0.0
    %v386 = vand.u32 %v90, 4294901760
    %v387 = vsub.f32 %v90, %v386
    %388 = vmatpush1.msra.mxu0 %v387
    %389 = vmatprep.subr.mxu0 0.0
    %v390 = vand.u32 %v91, 4294901760
    %v391 = vsub.f32 %v91, %v390
    %392 = vmatpush1.msra.mxu0 %v391
    %393 = vmatprep.subr.mxu0 0.0
    %v394 = vand.u32 %v92, 4294901760
    %v395 = vsub.f32 %v92, %v394
    %396 = vmatpush1.msra.mxu0 %v395
    %397 = vmatprep.subr.mxu0 0.0
    %v398 = vand.u32 %v93, 4294901760
    %v399 = vsub.f32 %v93, %v398
    %400 = vmatpush1.msra.mxu0 %v399
    %401 = vmatprep.subr.mxu0 0.0
    %402 = vmatpush1.msra.mxu0 0.0
    %403 = vmatprep.subr.mxu0 0.0
    %404 = vmatpush1.msra.mxu0 0.0
    %405 = vmatprep.subr.mxu0 0.0
    %406 = vmatpush1.msra.mxu0 0.0
    %407 = vmatprep.subr.mxu0 0.0
    %408 = vmatpush1.msra.mxu0 0.0
    %409 = vmatprep.subr.mxu0 0.0
    %410 = vmatpush1.msra.mxu0 0.0
    %411 = vmatprep.subr.mxu0 0.0
    %412 = vmatpush1.msra.mxu0 0.0
    %413 = vmatprep.subr.mxu0 0.0
    %414 = vmatpush1.msra.mxu0 0.0
    %415 = vmatprep.subr.mxu0 0.0
    %416 = vmatpush1.msra.mxu0 0.0
    %417 = vmatprep.subr.mxu0 0.0
    %418 = vmatpush1.msra.mxu0 0.0
    %419 = vmatprep.subr.mxu0 0.0
    %420 = vmatpush1.msra.mxu0 0.0
    %421 = vmatprep.subr.mxu0 0.0
    %422 = vmatpush1.msra.mxu0 0.0
    %423 = vmatprep.subr.mxu0 0.0
    %424 = vmatpush1.msra.mxu0 0.0
    %425 = vmatprep.subr.mxu0 0.0
    %426 = vmatpush1.msra.mxu0 0.0
    %427 = vmatprep.subr.mxu0 0.0
    %428 = vmatpush1.msra.mxu0 0.0
    %429 = vmatprep.subr.mxu0 0.0
    %430 = vmatpush1.msra.mxu0 0.0
    %431 = vmatprep.subr.mxu0 0.0
    %432 = vmatpush1.msra.mxu0 0.0
    %433 = vmatprep.mubr.f32.mxu0 0.0
    %v434 = vand.u32 %v94, 4294901760
    %v435 = vsub.f32 %v94, %v434
    %436 = vmatmul.mubr.f32.gmra.mrb[0].mxu0 %v435
    %v437 = vpop.f32.mrb[0].mxu0
    %v438 = vadd.f32 %v334, %v437
    %v439 = vpop.f32.mrb[0].mxu0
    %440 = vdwg.mxu0
    %441 = vmatprep.subr.mxu0 0.0
    %v442 = vand.u32 %v78, 4294901760
    %443 = vmatpush1.msra.mxu0 %v442
    %444 = vmatprep.subr.mxu0 0.0
    %v445 = vand.u32 %v79, 4294901760
    %446 = vmatpush1.msra.mxu0 %v445
    %447 = vmatprep.subr.mxu0 0.0
    %v448 = vand.u32 %v80, 4294901760
    %449 = vmatpush1.msra.mxu0 %v448
    %450 = vmatprep.subr.mxu0 0.0
    %v451 = vand.u32 %v81, 4294901760
    %452 = vmatpush1.msra.mxu0 %v451
    %453 = vmatprep.subr.mxu0 0.0
    %v454 = vand.u32 %v82, 4294901760
    %455 = vmatpush1.msra.mxu0 %v454
    %456 = vmatprep.subr.mxu0 0.0
    %v457 = vand.u32 %v83, 4294901760
    %458 = vmatpush1.msra.mxu0 %v457
    %459 = vmatprep.subr.mxu0 0.0
    %v460 = vand.u32 %v84, 4294901760
    %461 = vmatpush1.msra.mxu0 %v460
    %462 = vmatprep.subr.mxu0 0.0
    %v463 = vand.u32 %v85, 4294901760
    %464 = vmatpush1.msra.mxu0 %v463
    %465 = vmatprep.subr.mxu0 0.0
    %v466 = vand.u32 %v86, 4294901760
    %467 = vmatpush1.msra.mxu0 %v466
    %468 = vmatprep.subr.mxu0 0.0
    %v469 = vand.u32 %v87, 4294901760
    %470 = vmatpush1.msra.mxu0 %v469
    %471 = vmatprep.subr.mxu0 0.0
    %v472 = vand.u32 %v88, 4294901760
    %473 = vmatpush1.msra.mxu0 %v472
    %474 = vmatprep.subr.mxu0 0.0
    %v475 = vand.u32 %v89, 4294901760
    %476 = vmatpush1.msra.mxu0 %v475
    %477 = vmatprep.subr.mxu0 0.0
    %v478 = vand.u32 %v90, 4294901760
    %479 = vmatpush1.msra.mxu0 %v478
    %480 = vmatprep.subr.mxu0 0.0
    %v481 = vand.u32 %v91, 4294901760
    %482 = vmatpush1.msra.mxu0 %v481
    %483 = vmatprep.subr.mxu0 0.0
    %v484 = vand.u32 %v92, 4294901760
    %485 = vmatpush1.msra.mxu0 %v484
    %486 = vmatprep.subr.mxu0 0.0
    %v487 = vand.u32 %v93, 4294901760
    %488 = vmatpush1.msra.mxu0 %v487
    %489 = vmatprep.subr.mxu0 0.0
    %490 = vmatpush1.msra.mxu0 0.0
    %491 = vmatprep.subr.mxu0 0.0
    %492 = vmatpush1.msra.mxu0 0.0
    %493 = vmatprep.subr.mxu0 0.0
    %494 = vmatpush1.msra.mxu0 0.0
    %495 = vmatprep.subr.mxu0 0.0
    %496 = vmatpush1.msra.mxu0 0.0
    %497 = vmatprep.subr.mxu0 0.0
    %498 = vmatpush1.msra.mxu0 0.0
    %499 = vmatprep.subr.mxu0 0.0
    %500 = vmatpush1.msra.mxu0 0.0
    %501 = vmatprep.subr.mxu0 0.0
    %502 = vmatpush1.msra.mxu0 0.0
    %503 = vmatprep.subr.mxu0 0.0
    %504 = vmatpush1.msra.mxu0 0.0
    %505 = vmatprep.subr.mxu0 0.0
    %506 = vmatpush1.msra.mxu0 0.0
    %507 = vmatprep.subr.mxu0 0.0
    %508 = vmatpush1.msra.mxu0 0.0
    %509 = vmatprep.subr.mxu0 0.0
    %510 = vmatpush1.msra.mxu0 0.0
    %511 = vmatprep.subr.mxu0 0.0
    %512 = vmatpush1.msra.mxu0 0.0
    %513 = vmatprep.subr.mxu0 0.0
    %514 = vmatpush1.msra.mxu0 0.0
    %515 = vmatprep.subr.mxu0 0.0
    %516 = vmatpush1.msra.mxu0 0.0
    %517 = vmatprep.subr.mxu0 0.0
    %518 = vmatpush1.msra.mxu0 0.0
    %519 = vmatprep.subr.mxu0 0.0
    %520 = vmatpush1.msra.mxu0 0.0
    %521 = vmatprep.mubr.f32.mxu0 0.0
    %v522 = vand.u32 %v94, 4294901760
    %v523 = vsub.f32 %v94, %v522
    %v524 = vand.u32 %v523, 4294901760
    %525 = vmatmul.mubr.f32.gmra.mrb[0].mxu0 %v524
    %v526 = vpop.f32.mrb[0].mxu0
    %v527 = vadd.f32 %v438, %v526
    %v528 = vpop.f32.mrb[0].mxu0
    %529 = vdwg.mxu0
    %530 = vmatprep.subr.mxu0 0.0
    %v531 = vand.u32 %v78, 4294901760
    %v532 = vsub.f32 %v78, %v531
    %v533 = vand.u32 %v532, 4294901760
    %534 = vmatpush1.msra.mxu0 %v533
    %535 = vmatprep.subr.mxu0 0.0
    %v536 = vand.u32 %v79, 4294901760
    %v537 = vsub.f32 %v79, %v536
    %v538 = vand.u32 %v537, 4294901760
    %539 = vmatpush1.msra.mxu0 %v538
    %540 = vmatprep.subr.mxu0 0.0
    %v541 = vand.u32 %v80, 4294901760
    %v542 = vsub.f32 %v80, %v541
    %v543 = vand.u32 %v542, 4294901760
    %544 = vmatpush1.msra.mxu0 %v543
    %545 = vmatprep.subr.mxu0 0.0
    %v546 = vand.u32 %v81, 4294901760
    %v547 = vsub.f32 %v81, %v546
    %v548 = vand.u32 %v547, 4294901760
    %549 = vmatpush1.msra.mxu0 %v548
    %550 = vmatprep.subr.mxu0 0.0
    %v551 = vand.u32 %v82, 4294901760
    %v552 = vsub.f32 %v82, %v551
    %v553 = vand.u32 %v552, 4294901760
    %554 = vmatpush1.msra.mxu0 %v553
    %555 = vmatprep.subr.mxu0 0.0
    %v556 = vand.u32 %v83, 4294901760
    %v557 = vsub.f32 %v83, %v556
    %v558 = vand.u32 %v557, 4294901760
    %559 = vmatpush1.msra.mxu0 %v558
    %560 = vmatprep.subr.mxu0 0.0
    %v561 = vand.u32 %v84, 4294901760
    %v562 = vsub.f32 %v84, %v561
    %v563 = vand.u32 %v562, 4294901760
    %564 = vmatpush1.msra.mxu0 %v563
    %565 = vmatprep.subr.mxu0 0.0
    %v566 = vand.u32 %v85, 4294901760
    %v567 = vsub.f32 %v85, %v566
    %v568 = vand.u32 %v567, 4294901760
    %569 = vmatpush1.msra.mxu0 %v568
    %570 = vmatprep.subr.mxu0 0.0
    %v571 = vand.u32 %v86, 4294901760
    %v572 = vsub.f32 %v86, %v571
    %v573 = vand.u32 %v572, 4294901760
    %574 = vmatpush1.msra.mxu0 %v573
    %575 = vmatprep.subr.mxu0 0.0
    %v576 = vand.u32 %v87, 4294901760
    %v577 = vsub.f32 %v87, %v576
    %v578 = vand.u32 %v577, 4294901760
    %579 = vmatpush1.msra.mxu0 %v578
    %580 = vmatprep.subr.mxu0 0.0
    %v581 = vand.u32 %v88, 4294901760
    %v582 = vsub.f32 %v88, %v581
    %v583 = vand.u32 %v582, 4294901760
    %584 = vmatpush1.msra.mxu0 %v583
    %585 = vmatprep.subr.mxu0 0.0
    %v586 = vand.u32 %v89, 4294901760
    %v587 = vsub.f32 %v89, %v586
    %v588 = vand.u32 %v587, 4294901760
    %589 = vmatpush1.msra.mxu0 %v588
    %590 = vmatprep.subr.mxu0 0.0
    %v591 = vand.u32 %v90, 4294901760
    %v592 = vsub.f32 %v90, %v591
    %v593 = vand.u32 %v592, 4294901760
    %594 = vmatpush1.msra.mxu0 %v593
    %595 = vmatprep.subr.mxu0 0.0
    %v596 = vand.u32 %v91, 4294901760
    %v597 = vsub.f32 %v91, %v596
    %v598 = vand.u32 %v597, 4294901760
    %599 = vmatpush1.msra.mxu0 %v598
    %600 = vmatprep.subr.mxu0 0.0
    %v601 = vand.u32 %v92, 4294901760
    %v602 = vsub.f32 %v92, %v601
    %v603 = vand.u32 %v602, 4294901760
    %604 = vmatpush1.msra.mxu0 %v603
    %605 = vmatprep.subr.mxu0 0.0
    %v606 = vand.u32 %v93, 4294901760
    %v607 = vsub.f32 %v93, %v606
    %v608 = vand.u32 %v607, 4294901760
    %609 = vmatpush1.msra.mxu0 %v608
    %610 = vmatprep.subr.mxu0 0.0
    %611 = vmatpush1.msra.mxu0 0.0
    %612 = vmatprep.subr.mxu0 0.0
    %613 = vmatpush1.msra.mxu0 0.0
    %614 = vmatprep.subr.mxu0 0.0
    %615 = vmatpush1.msra.mxu0 0.0
    %616 = vmatprep.subr.mxu0 0.0
    %617 = vmatpush1.msra.mxu0 0.0
    %618 = vmatprep.subr.mxu0 0.0
    %619 = vmatpush1.msra.mxu0 0.0
    %620 = vmatprep.subr.mxu0 0.0
    %621 = vmatpush1.msra.mxu0 0.0
    %622 = vmatprep.subr.mxu0 0.0
    %623 = vmatpush1.msra.mxu0 0.0
    %624 = vmatprep.subr.mxu0 0.0
    %625 = vmatpush1.msra.mxu0 0.0
    %626 = vmatprep.subr.mxu0 0.0
    %627 = vmatpush1.msra.mxu0 0.0
    %628 = vmatprep.subr.mxu0 0.0
    %629 = vmatpush1.msra.mxu0 0.0
    %630 = vmatprep.subr.mxu0 0.0
    %631 = vmatpush1.msra.mxu0 0.0
    %632 = vmatprep.subr.mxu0 0.0
    %633 = vmatpush1.msra.mxu0 0.0
    %634 = vmatprep.subr.mxu0 0.0
    %635 = vmatpush1.msra.mxu0 0.0
    %636 = vmatprep.subr.mxu0 0.0
    %637 = vmatpush1.msra.mxu0 0.0
    %638 = vmatprep.subr.mxu0 0.0
    %639 = vmatpush1.msra.mxu0 0.0
    %640 = vmatprep.subr.mxu0 0.0
    %641 = vmatpush1.msra.mxu0 0.0
    %642 = vmatprep.mubr.f32.mxu0 0.0
    %v643 = vand.u32 %v94, 4294901760
    %644 = vmatmul.mubr.f32.gmra.mrb[0].mxu0 %v643
    %v645 = vpop.f32.mrb[0].mxu0
    %v646 = vadd.f32 %v527, %v645
    %v647 = vpop.f32.mrb[0].mxu0
    %648 = vdwg.mxu0
    %649 = vmatprep.subr.mxu0 0.0
    %v650 = vand.u32 %v78, 4294901760
    %651 = vmatpush1.msra.mxu0 %v650
    %652 = vmatprep.subr.mxu0 0.0
    %v653 = vand.u32 %v79, 4294901760
    %654 = vmatpush1.msra.mxu0 %v653
    %655 = vmatprep.subr.mxu0 0.0
    %v656 = vand.u32 %v80, 4294901760
    %657 = vmatpush1.msra.mxu0 %v656
    %658 = vmatprep.subr.mxu0 0.0
    %v659 = vand.u32 %v81, 4294901760
    %660 = vmatpush1.msra.mxu0 %v659
    %661 = vmatprep.subr.mxu0 0.0
    %v662 = vand.u32 %v82, 4294901760
    %663 = vmatpush1.msra.mxu0 %v662
    %664 = vmatprep.subr.mxu0 0.0
    %v665 = vand.u32 %v83, 4294901760
    %666 = vmatpush1.msra.mxu0 %v665
    %667 = vmatprep.subr.mxu0 0.0
    %v668 = vand.u32 %v84, 4294901760
    %669 = vmatpush1.msra.mxu0 %v668
    %670 = vmatprep.subr.mxu0 0.0
    %v671 = vand.u32 %v85, 4294901760
    %672 = vmatpush1.msra.mxu0 %v671
    %673 = vmatprep.subr.mxu0 0.0
    %v674 = vand.u32 %v86, 4294901760
    %675 = vmatpush1.msra.mxu0 %v674
    %676 = vmatprep.subr.mxu0 0.0
    %v677 = vand.u32 %v87, 4294901760
    %678 = vmatpush1.msra.mxu0 %v677
    %679 = vmatprep.subr.mxu0 0.0
    %v680 = vand.u32 %v88, 4294901760
    %681 = vmatpush1.msra.mxu0 %v680
    %682 = vmatprep.subr.mxu0 0.0
    %v683 = vand.u32 %v89, 4294901760
    %684 = vmatpush1.msra.mxu0 %v683
    %685 = vmatprep.subr.mxu0 0.0
    %v686 = vand.u32 %v90, 4294901760
    %687 = vmatpush1.msra.mxu0 %v686
    %688 = vmatprep.subr.mxu0 0.0
    %v689 = vand.u32 %v91, 4294901760
    %690 = vmatpush1.msra.mxu0 %v689
    %691 = vmatprep.subr.mxu0 0.0
    %v692 = vand.u32 %v92, 4294901760
    %693 = vmatpush1.msra.mxu0 %v692
    %694 = vmatprep.subr.mxu0 0.0
    %v695 = vand.u32 %v93, 4294901760
    %696 = vmatpush1.msra.mxu0 %v695
    %697 = vmatprep.subr.mxu0 0.0
    %698 = vmatpush1.msra.mxu0 0.0
    %699 = vmatprep.subr.mxu0 0.0
    %700 = vmatpush1.msra.mxu0 0.0
    %701 = vmatprep.subr.mxu0 0.0
    %702 = vmatpush1.msra.mxu0 0.0
    %703 = vmatprep.subr.mxu0 0.0
    %704 = vmatpush1.msra.mxu0 0.0
    %705 = vmatprep.subr.mxu0 0.0
    %706 = vmatpush1.msra.mxu0 0.0
    %707 = vmatprep.subr.mxu0 0.0
    %708 = vmatpush1.msra.mxu0 0.0
    %709 = vmatprep.subr.mxu0 0.0
    %710 = vmatpush1.msra.mxu0 0.0
    %711 = vmatprep.subr.mxu0 0.0
    %712 = vmatpush1.msra.mxu0 0.0
    %713 = vmatprep.subr.mxu0 0.0
    %714 = vmatpush1.msra.mxu0 0.0
    %715 = vmatprep.subr.mxu0 0.0
    %716 = vmatpush1.msra.mxu0 0.0
    %717 = vmatprep.subr.mxu0 0.0
    %718 = vmatpush1.msra.mxu0 0.0
    %719 = vmatprep.subr.mxu0 0.0
    %720 = vmatpush1.msra.mxu0 0.0
    %721 = vmatprep.subr.mxu0 0.0
    %722 = vmatpush1.msra.mxu0 0.0
    %723 = vmatprep.subr.mxu0 0.0
    %724 = vmatpush1.msra.mxu0 0.0
    %725 = vmatprep.subr.mxu0 0.0
    %726 = vmatpush1.msra.mxu0 0.0
    %727 = vmatprep.subr.mxu0 0.0
    %728 = vmatpush1.msra.mxu0 0.0
    %729 = vmatprep.mubr.f32.mxu0 0.0
    %v730 = vand.u32 %v94, 4294901760
    %731 = vmatmul.mubr.f32.gmra.mrb[0].mxu0 %v730
    %v732 = vpop.f32.mrb[0].mxu0
    %v733 = vadd.f32 %v646, %v732
    %v734 = vpop.f32.mrb[0].mxu0
    %735 = vdwg.mxu0
    %v736 = vmul.f32 %v75, %v75
    %737 = vmatprep.subr.mxu0 0.0
    %v738 = vand.u32 %v78, 4294901760
    %739 = vmatpush1.msra.mxu0 %v738
    %740 = vmatprep.subr.mxu0 0.0
    %v741 = vand.u32 %v79, 4294901760
    %742 = vmatpush1.msra.mxu0 %v741
    %743 = vmatprep.subr.mxu0 0.0
    %v744 = vand.u32 %v80, 4294901760
    %745 = vmatpush1.msra.mxu0 %v744
    %746 = vmatprep.subr.mxu0 0.0
    %v747 = vand.u32 %v81, 4294901760
    %748 = vmatpush1.msra.mxu0 %v747
    %749 = vmatprep.subr.mxu0 0.0
    %v750 = vand.u32 %v82, 4294901760
    %751 = vmatpush1.msra.mxu0 %v750
    %752 = vmatprep.subr.mxu0 0.0
    %v753 = vand.u32 %v83, 4294901760
    %754 = vmatpush1.msra.mxu0 %v753
    %755 = vmatprep.subr.mxu0 0.0
    %v756 = vand.u32 %v84, 4294901760
    %757 = vmatpush1.msra.mxu0 %v756
    %758 = vmatprep.subr.mxu0 0.0
    %v759 = vand.u32 %v85, 4294901760
    %760 = vmatpush1.msra.mxu0 %v759
    %761 = vmatprep.subr.mxu0 0.0
    %v762 = vand.u32 %v86, 4294901760
    %763 = vmatpush1.msra.mxu0 %v762
    %764 = vmatprep.subr.mxu0 0.0
    %v765 = vand.u32 %v87, 4294901760
    %766 = vmatpush1.msra.mxu0 %v765
    %767 = vmatprep.subr.mxu0 0.0
    %v768 = vand.u32 %v88, 4294901760
    %769 = vmatpush1.msra.mxu0 %v768
    %770 = vmatprep.subr.mxu0 0.0
    %v771 = vand.u32 %v89, 4294901760
    %772 = vmatpush1.msra.mxu0 %v771
    %773 = vmatprep.subr.mxu0 0.0
    %v774 = vand.u32 %v90, 4294901760
    %775 = vmatpush1.msra.mxu0 %v774
    %776 = vmatprep.subr.mxu0 0.0
    %v777 = vand.u32 %v91, 4294901760
    %778 = vmatpush1.msra.mxu0 %v777
    %779 = vmatprep.subr.mxu0 0.0
    %v780 = vand.u32 %v92, 4294901760
    %781 = vmatpush1.msra.mxu0 %v780
    %782 = vmatprep.subr.mxu0 0.0
    %v783 = vand.u32 %v93, 4294901760
    %784 = vmatpush1.msra.mxu0 %v783
    %785 = vmatprep.subr.mxu0 0.0
    %786 = vmatpush1.msra.mxu0 0.0
    %787 = vmatprep.subr.mxu0 0.0
    %788 = vmatpush1.msra.mxu0 0.0
    %789 = vmatprep.subr.mxu0 0.0
    %790 = vmatpush1.msra.mxu0 0.0
    %791 = vmatprep.subr.mxu0 0.0
    %792 = vmatpush1.msra.mxu0 0.0
    %793 = vmatprep.subr.mxu0 0.0
    %794 = vmatpush1.msra.mxu0 0.0
    %795 = vmatprep.subr.mxu0 0.0
    %796 = vmatpush1.msra.mxu0 0.0
    %797 = vmatprep.subr.mxu0 0.0
    %798 = vmatpush1.msra.mxu0 0.0
    %799 = vmatprep.subr.mxu0 0.0
    %800 = vmatpush1.msra.mxu0 0.0
    %801 = vmatprep.subr.mxu0 0.0
    %802 = vmatpush1.msra.mxu0 0.0
    %803 = vmatprep.subr.mxu0 0.0
    %804 = vmatpush1.msra.mxu0 0.0
    %805 = vmatprep.subr.mxu0 0.0
    %806 = vmatpush1.msra.mxu0 0.0
    %807 = vmatprep.subr.mxu0 0.0
    %808 = vmatpush1.msra.mxu0 0.0
    %809 = vmatprep.subr.mxu0 0.0
    %810 = vmatpush1.msra.mxu0 0.0
    %811 = vmatprep.subr.mxu0 0.0
    %812 = vmatpush1.msra.mxu0 0.0
    %813 = vmatprep.subr.mxu0 0.0
    %814 = vmatpush1.msra.mxu0 0.0
    %815 = vmatprep.subr.mxu0 0.0
    %816 = vmatpush1.msra.mxu0 0.0
    %817 = vmatprep.mubr.f32.mxu0 0.0
    %v818 = vand.u32 %v736, 4294901760
    %v819 = vsub.f32 %v736, %v818
    %v820 = vand.u32 %v819, 4294901760
    %v821 = vsub.f32 %v819, %v820
    %v822 = vand.u32 %v821, 4294901760
    %823 = vmatmul.mubr.f32.gmra.mrb[0].mxu0 %v822
    %v824 = vpop.f32.mrb[0].mxu0
    %v825 = vadd.f32 0.0, %v824
    %v826 = vpop.f32.mrb[0].mxu0
    %827 = vdwg.mxu0
    %828 = vmatprep.subr.mxu0 0.0
    %v829 = vand.u32 %v78, 4294901760
    %v830 = vsub.f32 %v78, %v829
    %v831 = vand.u32 %v830, 4294901760
    %v832 = vsub.f32 %v830, %v831
    %v833 = vand.u32 %v832, 4294901760
    %834 = vmatpush1.msra.mxu0 %v833
    %835 = vmatprep.subr.mxu0 0.0
    %v836 = vand.u32 %v79, 4294901760
    %v837 = vsub.f32 %v79, %v836
    %v838 = vand.u32 %v837, 4294901760
    %v839 = vsub.f32 %v837, %v838
    %v840 = vand.u32 %v839, 4294901760
    %841 = vmatpush1.msra.mxu0 %v840
    %842 = vmatprep.subr.mxu0 0.0
    %v843 = vand.u32 %v80, 4294901760
    %v844 = vsub.f32 %v80, %v843
    %v845 = vand.u32 %v844, 4294901760
    %v846 = vsub.f32 %v844, %v845
    %v847 = vand.u32 %v846, 4294901760
    %848 = vmatpush1.msra.mxu0 %v847
    %849 = vmatprep.subr.mxu0 0.0
    %v850 = vand.u32 %v81, 4294901760
    %v851 = vsub.f32 %v81, %v850
    %v852 = vand.u32 %v851, 4294901760
    %v853 = vsub.f32 %v851, %v852
    %v854 = vand.u32 %v853, 4294901760
    %855 = vmatpush1.msra.mxu0 %v854
    %856 = vmatprep.subr.mxu0 0.0
    %v857 = vand.u32 %v82, 4294901760
    %v858 = vsub.f32 %v82, %v857
    %v859 = vand.u32 %v858, 4294901760
    %v860 = vsub.f32 %v858, %v859
    %v861 = vand.u32 %v860, 4294901760
    %862 = vmatpush1.msra.mxu0 %v861
    %863 = vmatprep.subr.mxu0 0.0
    %v864 = vand.u32 %v83, 4294901760
    %v865 = vsub.f32 %v83, %v864
    %v866 = vand.u32 %v865, 4294901760
    %v867 = vsub.f32 %v865, %v866
    %v868 = vand.u32 %v867, 4294901760
    %869 = vmatpush1.msra.mxu0 %v868
    %870 = vmatprep.subr.mxu0 0.0
    %v871 = vand.u32 %v84, 4294901760
    %v872 = vsub.f32 %v84, %v871
    %v873 = vand.u32 %v872, 4294901760
    %v874 = vsub.f32 %v872, %v873
    %v875 = vand.u32 %v874, 4294901760
    %876 = vmatpush1.msra.mxu0 %v875
    %877 = vmatprep.subr.mxu0 0.0
    %v878 = vand.u32 %v85, 4294901760
    %v879 = vsub.f32 %v85, %v878
    %v880 = vand.u32 %v879, 4294901760
    %v881 = vsub.f32 %v879, %v880
    %v882 = vand.u32 %v881, 4294901760
    %883 = vmatpush1.msra.mxu0 %v882
    %884 = vmatprep.subr.mxu0 0.0
    %v885 = vand.u32 %v86, 4294901760
    %v886 = vsub.f32 %v86, %v885
    %v887 = vand.u32 %v886, 4294901760
    %v888 = vsub.f32 %v886, %v887
    %v889 = vand.u32 %v888, 4294901760
    %890 = vmatpush1.msra.mxu0 %v889
    %891 = vmatprep.subr.mxu0 0.0
    %v892 = vand.u32 %v87, 4294901760
    %v893 = vsub.f32 %v87, %v892
    %v894 = vand.u32 %v893, 4294901760
    %v895 = vsub.f32 %v893, %v894
    %v896 = vand.u32 %v895, 4294901760
    %897 = vmatpush1.msra.mxu0 %v896
    %898 = vmatprep.subr.mxu0 0.0
    %v899 = vand.u32 %v88, 4294901760
    %v900 = vsub.f32 %v88, %v899
    %v901 = vand.u32 %v900, 4294901760
    %v902 = vsub.f32 %v900, %v901
    %v903 = vand.u32 %v902, 4294901760
    %904 = vmatpush1.msra.mxu0 %v903
    %905 = vmatprep.subr.mxu0 0.0
    %v906 = vand.u32 %v89, 4294901760
    %v907 = vsub.f32 %v89, %v906
    %v908 = vand.u32 %v907, 4294901760
    %v909 = vsub.f32 %v907, %v908
    %v910 = vand.u32 %v909, 4294901760
    %911 = vmatpush1.msra.mxu0 %v910
    %912 = vmatprep.subr.mxu0 0.0
    %v913 = vand.u32 %v90, 4294901760
    %v914 = vsub.f32 %v90, %v913
    %v915 = vand.u32 %v914, 4294901760
    %v916 = vsub.f32 %v914, %v915
    %v917 = vand.u32 %v916, 4294901760
    %918 = vmatpush1.msra.mxu0 %v917
    %919 = vmatprep.subr.mxu0 0.0
    %v920 = vand.u32 %v91, 4294901760
    %v921 = vsub.f32 %v91, %v920
    %v922 = vand.u32 %v921, 4294901760
    %v923 = vsub.f32 %v921, %v922
    %v924 = vand.u32 %v923, 4294901760
    %925 = vmatpush1.msra.mxu0 %v924
    %926 = vmatprep.subr.mxu0 0.0
    %v927 = vand.u32 %v92, 4294901760
    %v928 = vsub.f32 %v92, %v927
    %v929 = vand.u32 %v928, 4294901760
    %v930 = vsub.f32 %v928, %v929
    %v931 = vand.u32 %v930, 4294901760
    %932 = vmatpush1.msra.mxu0 %v931
    %933 = vmatprep.subr.mxu0 0.0
    %v934 = vand.u32 %v93, 4294901760
    %v935 = vsub.f32 %v93, %v934
    %v936 = vand.u32 %v935, 4294901760
    %v937 = vsub.f32 %v935, %v936
    %v938 = vand.u32 %v937, 4294901760
    %939 = vmatpush1.msra.mxu0 %v938
    %940 = vmatprep.subr.mxu0 0.0
    %941 = vmatpush1.msra.mxu0 0.0
    %942 = vmatprep.subr.mxu0 0.0
    %943 = vmatpush1.msra.mxu0 0.0
    %944 = vmatprep.subr.mxu0 0.0
    %945 = vmatpush1.msra.mxu0 0.0
    %946 = vmatprep.subr.mxu0 0.0
    %947 = vmatpush1.msra.mxu0 0.0
    %948 = vmatprep.subr.mxu0 0.0
    %949 = vmatpush1.msra.mxu0 0.0
    %950 = vmatprep.subr.mxu0 0.0
    %951 = vmatpush1.msra.mxu0 0.0
    %952 = vmatprep.subr.mxu0 0.0
    %953 = vmatpush1.msra.mxu0 0.0
    %954 = vmatprep.subr.mxu0 0.0
    %955 = vmatpush1.msra.mxu0 0.0
    %956 = vmatprep.subr.mxu0 0.0
    %957 = vmatpush1.msra.mxu0 0.0
    %958 = vmatprep.subr.mxu0 0.0
    %959 = vmatpush1.msra.mxu0 0.0
    %960 = vmatprep.subr.mxu0 0.0
    %961 = vmatpush1.msra.mxu0 0.0
    %962 = vmatprep.subr.mxu0 0.0
    %963 = vmatpush1.msra.mxu0 0.0
    %964 = vmatprep.subr.mxu0 0.0
    %965 = vmatpush1.msra.mxu0 0.0
    %966 = vmatprep.subr.mxu0 0.0
    %967 = vmatpush1.msra.mxu0 0.0
    %968 = vmatprep.subr.mxu0 0.0
    %969 = vmatpush1.msra.mxu0 0.0
    %970 = vmatprep.subr.mxu0 0.0
    %971 = vmatpush1.msra.mxu0 0.0
    %972 = vmatprep.mubr.f32.mxu0 0.0
    %v973 = vand.u32 %v736, 4294901760
    %974 = vmatmul.mubr.f32.gmra.mrb[0].mxu0 %v973
    %v975 = vpop.f32.mrb[0].mxu0
    %v976 = vadd.f32 %v825, %v975
    %v977 = vpop.f32.mrb[0].mxu0
    %978 = vdwg.mxu0
    %979 = vmatprep.subr.mxu0 0.0
    %v980 = vand.u32 %v78, 4294901760
    %v981 = vsub.f32 %v78, %v980
    %982 = vmatpush1.msra.mxu0 %v981
    %983 = vmatprep.subr.mxu0 0.0
    %v984 = vand.u32 %v79, 4294901760
    %v985 = vsub.f32 %v79, %v984
    %986 = vmatpush1.msra.mxu0 %v985
    %987 = vmatprep.subr.mxu0 0.0
    %v988 = vand.u32 %v80, 4294901760
    %v989 = vsub.f32 %v80, %v988
    %990 = vmatpush1.msra.mxu0 %v989
    %991 = vmatprep.subr.mxu0 0.0
    %v992 = vand.u32 %v81, 4294901760
    %v993 = vsub.f32 %v81, %v992
    %994 = vmatpush1.msra.mxu0 %v993
    %995 = vmatprep.subr.mxu0 0.0
    %v996 = vand.u32 %v82, 4294901760
    %v997 = vsub.f32 %v82, %v996
    %998 = vmatpush1.msra.mxu0 %v997
    %999 = vmatprep.subr.mxu0 0.0
    %v1000 = vand.u32 %v83, 4294901760
    %v1001 = vsub.f32 %v83, %v1000
    %1002 = vmatpush1.msra.mxu0 %v1001
    %1003 = vmatprep.subr.mxu0 0.0
    %v1004 = vand.u32 %v84, 4294901760
    %v1005 = vsub.f32 %v84, %v1004
    %1006 = vmatpush1.msra.mxu0 %v1005
    %1007 = vmatprep.subr.mxu0 0.0
    %v1008 = vand.u32 %v85, 4294901760
    %v1009 = vsub.f32 %v85, %v1008
    %1010 = vmatpush1.msra.mxu0 %v1009
    %1011 = vmatprep.subr.mxu0 0.0
    %v1012 = vand.u32 %v86, 4294901760
    %v1013 = vsub.f32 %v86, %v1012
    %1014 = vmatpush1.msra.mxu0 %v1013
    %1015 = vmatprep.subr.mxu0 0.0
    %v1016 = vand.u32 %v87, 4294901760
    %v1017 = vsub.f32 %v87, %v1016
    %1018 = vmatpush1.msra.mxu0 %v1017
    %1019 = vmatprep.subr.mxu0 0.0
    %v1020 = vand.u32 %v88, 4294901760
    %v1021 = vsub.f32 %v88, %v1020
    %1022 = vmatpush1.msra.mxu0 %v1021
    %1023 = vmatprep.subr.mxu0 0.0
    %v1024 = vand.u32 %v89, 4294901760
    %v1025 = vsub.f32 %v89, %v1024
    %1026 = vmatpush1.msra.mxu0 %v1025
    %1027 = vmatprep.subr.mxu0 0.0
    %v1028 = vand.u32 %v90, 4294901760
    %v1029 = vsub.f32 %v90, %v1028
    %1030 = vmatpush1.msra.mxu0 %v1029
    %1031 = vmatprep.subr.mxu0 0.0
    %v1032 = vand.u32 %v91, 4294901760
    %v1033 = vsub.f32 %v91, %v1032
    %1034 = vmatpush1.msra.mxu0 %v1033
    %1035 = vmatprep.subr.mxu0 0.0
    %v1036 = vand.u32 %v92, 4294901760
    %v1037 = vsub.f32 %v92, %v1036
    %1038 = vmatpush1.msra.mxu0 %v1037
    %1039 = vmatprep.subr.mxu0 0.0
    %v1040 = vand.u32 %v93, 4294901760
    %v1041 = vsub.f32 %v93, %v1040
    %1042 = vmatpush1.msra.mxu0 %v1041
    %1043 = vmatprep.subr.mxu0 0.0
    %1044 = vmatpush1.msra.mxu0 0.0
    %1045 = vmatprep.subr.mxu0 0.0
    %1046 = vmatpush1.msra.mxu0 0.0
    %1047 = vmatprep.subr.mxu0 0.0
    %1048 = vmatpush1.msra.mxu0 0.0
    %1049 = vmatprep.subr.mxu0 0.0
    %1050 = vmatpush1.msra.mxu0 0.0
    %1051 = vmatprep.subr.mxu0 0.0
    %1052 = vmatpush1.msra.mxu0 0.0
    %1053 = vmatprep.subr.mxu0 0.0
    %1054 = vmatpush1.msra.mxu0 0.0
    %1055 = vmatprep.subr.mxu0 0.0
    %1056 = vmatpush1.msra.mxu0 0.0
    %1057 = vmatprep.subr.mxu0 0.0
    %1058 = vmatpush1.msra.mxu0 0.0
    %1059 = vmatprep.subr.mxu0 0.0
    %1060 = vmatpush1.msra.mxu0 0.0
    %1061 = vmatprep.subr.mxu0 0.0
    %1062 = vmatpush1.msra.mxu0 0.0
    %1063 = vmatprep.subr.mxu0 0.0
    %1064 = vmatpush1.msra.mxu0 0.0
    %1065 = vmatprep.subr.mxu0 0.0
    %1066 = vmatpush1.msra.mxu0 0.0
    %1067 = vmatprep.subr.mxu0 0.0
    %1068 = vmatpush1.msra.mxu0 0.0
    %1069 = vmatprep.subr.mxu0 0.0
    %1070 = vmatpush1.msra.mxu0 0.0
    %1071 = vmatprep.subr.mxu0 0.0
    %1072 = vmatpush1.msra.mxu0 0.0
    %1073 = vmatprep.subr.mxu0 0.0
    %1074 = vmatpush1.msra.mxu0 0.0
    %1075 = vmatprep.mubr.f32.mxu0 0.0
    %v1076 = vand.u32 %v736, 4294901760
    %v1077 = vsub.f32 %v736, %v1076
    %1078 = vmatmul.mubr.f32.gmra.mrb[0].mxu0 %v1077
    %v1079 = vpop.f32.mrb[0].mxu0
    %v1080 = vadd.f32 %v976, %v1079
    %v1081 = vpop.f32.mrb[0].mxu0
    %1082 = vdwg.mxu0
    %1083 = vmatprep.subr.mxu0 0.0
    %v1084 = vand.u32 %v78, 4294901760
    %1085 = vmatpush1.msra.mxu0 %v1084
    %1086 = vmatprep.subr.mxu0 0.0
    %v1087 = vand.u32 %v79, 4294901760
    %1088 = vmatpush1.msra.mxu0 %v1087
    %1089 = vmatprep.subr.mxu0 0.0
    %v1090 = vand.u32 %v80, 4294901760
    %1091 = vmatpush1.msra.mxu0 %v1090
    %1092 = vmatprep.subr.mxu0 0.0
    %v1093 = vand.u32 %v81, 4294901760
    %1094 = vmatpush1.msra.mxu0 %v1093
    %1095 = vmatprep.subr.mxu0 0.0
    %v1096 = vand.u32 %v82, 4294901760
    %1097 = vmatpush1.msra.mxu0 %v1096
    %1098 = vmatprep.subr.mxu0 0.0
    %v1099 = vand.u32 %v83, 4294901760
    %1100 = vmatpush1.msra.mxu0 %v1099
    %1101 = vmatprep.subr.mxu0 0.0
    %v1102 = vand.u32 %v84, 4294901760
    %1103 = vmatpush1.msra.mxu0 %v1102
    %1104 = vmatprep.subr.mxu0 0.0
    %v1105 = vand.u32 %v85, 4294901760
    %1106 = vmatpush1.msra.mxu0 %v1105
    %1107 = vmatprep.subr.mxu0 0.0
    %v1108 = vand.u32 %v86, 4294901760
    %1109 = vmatpush1.msra.mxu0 %v1108
    %1110 = vmatprep.subr.mxu0 0.0
    %v1111 = vand.u32 %v87, 4294901760
    %1112 = vmatpush1.msra.mxu0 %v1111
    %1113 = vmatprep.subr.mxu0 0.0
    %v1114 = vand.u32 %v88, 4294901760
    %1115 = vmatpush1.msra.mxu0 %v1114
    %1116 = vmatprep.subr.mxu0 0.0
    %v1117 = vand.u32 %v89, 4294901760
    %1118 = vmatpush1.msra.mxu0 %v1117
    %1119 = vmatprep.subr.mxu0 0.0
    %v1120 = vand.u32 %v90, 4294901760
    %1121 = vmatpush1.msra.mxu0 %v1120
    %1122 = vmatprep.subr.mxu0 0.0
    %v1123 = vand.u32 %v91, 4294901760
    %1124 = vmatpush1.msra.mxu0 %v1123
    %1125 = vmatprep.subr.mxu0 0.0
    %v1126 = vand.u32 %v92, 4294901760
    %1127 = vmatpush1.msra.mxu0 %v1126
    %1128 = vmatprep.subr.mxu0 0.0
    %v1129 = vand.u32 %v93, 4294901760
    %1130 = vmatpush1.msra.mxu0 %v1129
    %1131 = vmatprep.subr.mxu0 0.0
    %1132 = vmatpush1.msra.mxu0 0.0
    %1133 = vmatprep.subr.mxu0 0.0
    %1134 = vmatpush1.msra.mxu0 0.0
    %1135 = vmatprep.subr.mxu0 0.0
    %1136 = vmatpush1.msra.mxu0 0.0
    %1137 = vmatprep.subr.mxu0 0.0
    %1138 = vmatpush1.msra.mxu0 0.0
    %1139 = vmatprep.subr.mxu0 0.0
    %1140 = vmatpush1.msra.mxu0 0.0
    %1141 = vmatprep.subr.mxu0 0.0
    %1142 = vmatpush1.msra.mxu0 0.0
    %1143 = vmatprep.subr.mxu0 0.0
    %1144 = vmatpush1.msra.mxu0 0.0
    %1145 = vmatprep.subr.mxu0 0.0
    %1146 = vmatpush1.msra.mxu0 0.0
    %1147 = vmatprep.subr.mxu0 0.0
    %1148 = vmatpush1.msra.mxu0 0.0
    %1149 = vmatprep.subr.mxu0 0.0
    %1150 = vmatpush1.msra.mxu0 0.0
    %1151 = vmatprep.subr.mxu0 0.0
    %1152 = vmatpush1.msra.mxu0 0.0
    %1153 = vmatprep.subr.mxu0 0.0
    %1154 = vmatpush1.msra.mxu0 0.0
    %1155 = vmatprep.subr.mxu0 0.0
    %1156 = vmatpush1.msra.mxu0 0.0
    %1157 = vmatprep.subr.mxu0 0.0
    %1158 = vmatpush1.msra.mxu0 0.0
    %1159 = vmatprep.subr.mxu0 0.0
    %1160 = vmatpush1.msra.mxu0 0.0
    %1161 = vmatprep.subr.mxu0 0.0
    %1162 = vmatpush1.msra.mxu0 0.0
    %1163 = vmatprep.mubr.f32.mxu0 0.0
    %v1164 = vand.u32 %v736, 4294901760
    %v1165 = vsub.f32 %v736, %v1164
    %v1166 = vand.u32 %v1165, 4294901760
    %1167 = vmatmul.mubr.f32.gmra.mrb[0].mxu0 %v1166
    %v1168 = vpop.f32.mrb[0].mxu0
    %v1169 = vadd.f32 %v1080, %v1168
    %v1170 = vpop.f32.mrb[0].mxu0
    %1171 = vdwg.mxu0
    %1172 = vmatprep.subr.mxu0 0.0
    %v1173 = vand.u32 %v78, 4294901760
    %v1174 = vsub.f32 %v78, %v1173
    %v1175 = vand.u32 %v1174, 4294901760
    %1176 = vmatpush1.msra.mxu0 %v1175
    %1177 = vmatprep.subr.mxu0 0.0
    %v1178 = vand.u32 %v79, 4294901760
    %v1179 = vsub.f32 %v79, %v1178
    %v1180 = vand.u32 %v1179, 4294901760
    %1181 = vmatpush1.msra.mxu0 %v1180
    %1182 = vmatprep.subr.mxu0 0.0
    %v1183 = vand.u32 %v80, 4294901760
    %v1184 = vsub.f32 %v80, %v1183
    %v1185 = vand.u32 %v1184, 4294901760
    %1186 = vmatpush1.msra.mxu0 %v1185
    %1187 = vmatprep.subr.mxu0 0.0
    %v1188 = vand.u32 %v81, 4294901760
    %v1189 = vsub.f32 %v81, %v1188
    %v1190 = vand.u32 %v1189, 4294901760
    %1191 = vmatpush1.msra.mxu0 %v1190
    %1192 = vmatprep.subr.mxu0 0.0
    %v1193 = vand.u32 %v82, 4294901760
    %v1194 = vsub.f32 %v82, %v1193
    %v1195 = vand.u32 %v1194, 4294901760
    %1196 = vmatpush1.msra.mxu0 %v1195
    %1197 = vmatprep.subr.mxu0 0.0
    %v1198 = vand.u32 %v83, 4294901760
    %v1199 = vsub.f32 %v83, %v1198
    %v1200 = vand.u32 %v1199, 4294901760
    %1201 = vmatpush1.msra.mxu0 %v1200
    %1202 = vmatprep.subr.mxu0 0.0
    %v1203 = vand.u32 %v84, 4294901760
    %v1204 = vsub.f32 %v84, %v1203
    %v1205 = vand.u32 %v1204, 4294901760
    %1206 = vmatpush1.msra.mxu0 %v1205
    %1207 = vmatprep.subr.mxu0 0.0
    %v1208 = vand.u32 %v85, 4294901760
    %v1209 = vsub.f32 %v85, %v1208
    %v1210 = vand.u32 %v1209, 4294901760
    %1211 = vmatpush1.msra.mxu0 %v1210
    %1212 = vmatprep.subr.mxu0 0.0
    %v1213 = vand.u32 %v86, 4294901760
    %v1214 = vsub.f32 %v86, %v1213
    %v1215 = vand.u32 %v1214, 4294901760
    %1216 = vmatpush1.msra.mxu0 %v1215
    %1217 = vmatprep.subr.mxu0 0.0
    %v1218 = vand.u32 %v87, 4294901760
    %v1219 = vsub.f32 %v87, %v1218
    %v1220 = vand.u32 %v1219, 4294901760
    %1221 = vmatpush1.msra.mxu0 %v1220
    %1222 = vmatprep.subr.mxu0 0.0
    %v1223 = vand.u32 %v88, 4294901760
    %v1224 = vsub.f32 %v88, %v1223
    %v1225 = vand.u32 %v1224, 4294901760
    %1226 = vmatpush1.msra.mxu0 %v1225
    %1227 = vmatprep.subr.mxu0 0.0
    %v1228 = vand.u32 %v89, 4294901760
    %v1229 = vsub.f32 %v89, %v1228
    %v1230 = vand.u32 %v1229, 4294901760
    %1231 = vmatpush1.msra.mxu0 %v1230
    %1232 = vmatprep.subr.mxu0 0.0
    %v1233 = vand.u32 %v90, 4294901760
    %v1234 = vsub.f32 %v90, %v1233
    %v1235 = vand.u32 %v1234, 4294901760
    %1236 = vmatpush1.msra.mxu0 %v1235
    %1237 = vmatprep.subr.mxu0 0.0
    %v1238 = vand.u32 %v91, 4294901760
    %v1239 = vsub.f32 %v91, %v1238
    %v1240 = vand.u32 %v1239, 4294901760
    %1241 = vmatpush1.msra.mxu0 %v1240
    %1242 = vmatprep.subr.mxu0 0.0
    %v1243 = vand.u32 %v92, 4294901760
    %v1244 = vsub.f32 %v92, %v1243
    %v1245 = vand.u32 %v1244, 4294901760
    %1246 = vmatpush1.msra.mxu0 %v1245
    %1247 = vmatprep.subr.mxu0 0.0
    %v1248 = vand.u32 %v93, 4294901760
    %v1249 = vsub.f32 %v93, %v1248
    %v1250 = vand.u32 %v1249, 4294901760
    %1251 = vmatpush1.msra.mxu0 %v1250
    %1252 = vmatprep.subr.mxu0 0.0
    %1253 = vmatpush1.msra.mxu0 0.0
    %1254 = vmatprep.subr.mxu0 0.0
    %1255 = vmatpush1.msra.mxu0 0.0
    %1256 = vmatprep.subr.mxu0 0.0
    %1257 = vmatpush1.msra.mxu0 0.0
    %1258 = vmatprep.subr.mxu0 0.0
    %1259 = vmatpush1.msra.mxu0 0.0
    %1260 = vmatprep.subr.mxu0 0.0
    %1261 = vmatpush1.msra.mxu0 0.0
    %1262 = vmatprep.subr.mxu0 0.0
    %1263 = vmatpush1.msra.mxu0 0.0
    %1264 = vmatprep.subr.mxu0 0.0
    %1265 = vmatpush1.msra.mxu0 0.0
    %1266 = vmatprep.subr.mxu0 0.0
    %1267 = vmatpush1.msra.mxu0 0.0
    %1268 = vmatprep.subr.mxu0 0.0
    %1269 = vmatpush1.msra.mxu0 0.0
    %1270 = vmatprep.subr.mxu0 0.0
    %1271 = vmatpush1.msra.mxu0 0.0
    %1272 = vmatprep.subr.mxu0 0.0
    %1273 = vmatpush1.msra.mxu0 0.0
    %1274 = vmatprep.subr.mxu0 0.0
    %1275 = vmatpush1.msra.mxu0 0.0
    %1276 = vmatprep.subr.mxu0 0.0
    %1277 = vmatpush1.msra.mxu0 0.0
    %1278 = vmatprep.subr.mxu0 0.0
    %1279 = vmatpush1.msra.mxu0 0.0
    %1280 = vmatprep.subr.mxu0 0.0
    %1281 = vmatpush1.msra.mxu0 0.0
    %1282 = vmatprep.subr.mxu0 0.0
    %1283 = vmatpush1.msra.mxu0 0.0
    %1284 = vmatprep.mubr.f32.mxu0 0.0
    %v1285 = vand.u32 %v736, 4294901760
    %1286 = vmatmul.mubr.f32.gmra.mrb[0].mxu0 %v1285
    %v1287 = vpop.f32.mrb[0].mxu0
    %v1288 = vadd.f32 %v1169, %v1287
    %v1289 = vpop.f32.mrb[0].mxu0
    %1290 = vdwg.mxu0
    %1291 = vmatprep.subr.mxu0 0.0
    %v1292 = vand.u32 %v78, 4294901760
    %1293 = vmatpush1.msra.mxu0 %v1292
    %1294 = vmatprep.subr.mxu0 0.0
    %v1295 = vand.u32 %v79, 4294901760
    %1296 = vmatpush1.msra.mxu0 %v1295
    %1297 = vmatprep.subr.mxu0 0.0
    %v1298 = vand.u32 %v80, 4294901760
    %1299 = vmatpush1.msra.mxu0 %v1298
    %1300 = vmatprep.subr.mxu0 0.0
    %v1301 = vand.u32 %v81, 4294901760
    %1302 = vmatpush1.msra.mxu0 %v1301
    %1303 = vmatprep.subr.mxu0 0.0
    %v1304 = vand.u32 %v82, 4294901760
    %1305 = vmatpush1.msra.mxu0 %v1304
    %1306 = vmatprep.subr.mxu0 0.0
    %v1307 = vand.u32 %v83, 4294901760
    %1308 = vmatpush1.msra.mxu0 %v1307
    %1309 = vmatprep.subr.mxu0 0.0
    %v1310 = vand.u32 %v84, 4294901760
    %1311 = vmatpush1.msra.mxu0 %v1310
    %1312 = vmatprep.subr.mxu0 0.0
    %v1313 = vand.u32 %v85, 4294901760
    %1314 = vmatpush1.msra.mxu0 %v1313
    %1315 = vmatprep.subr.mxu0 0.0
    %v1316 = vand.u32 %v86, 4294901760
    %1317 = vmatpush1.msra.mxu0 %v1316
    %1318 = vmatprep.subr.mxu0 0.0
    %v1319 = vand.u32 %v87, 4294901760
    %1320 = vmatpush1.msra.mxu0 %v1319
    %1321 = vmatprep.subr.mxu0 0.0
    %v1322 = vand.u32 %v88, 4294901760
    %1323 = vmatpush1.msra.mxu0 %v1322
    %1324 = vmatprep.subr.mxu0 0.0
    %v1325 = vand.u32 %v89, 4294901760
    %1326 = vmatpush1.msra.mxu0 %v1325
    %1327 = vmatprep.subr.mxu0 0.0
    %v1328 = vand.u32 %v90, 4294901760
    %1329 = vmatpush1.msra.mxu0 %v1328
    %1330 = vmatprep.subr.mxu0 0.0
    %v1331 = vand.u32 %v91, 4294901760
    %1332 = vmatpush1.msra.mxu0 %v1331
    %1333 = vmatprep.subr.mxu0 0.0
    %v1334 = vand.u32 %v92, 4294901760
    %1335 = vmatpush1.msra.mxu0 %v1334
    %1336 = vmatprep.subr.mxu0 0.0
    %v1337 = vand.u32 %v93, 4294901760
    %1338 = vmatpush1.msra.mxu0 %v1337
    %1339 = vmatprep.subr.mxu0 0.0
    %1340 = vmatpush1.msra.mxu0 0.0
    %1341 = vmatprep.subr.mxu0 0.0
    %1342 = vmatpush1.msra.mxu0 0.0
    %1343 = vmatprep.subr.mxu0 0.0
    %1344 = vmatpush1.msra.mxu0 0.0
    %1345 = vmatprep.subr.mxu0 0.0
    %1346 = vmatpush1.msra.mxu0 0.0
    %1347 = vmatprep.subr.mxu0 0.0
    %1348 = vmatpush1.msra.mxu0 0.0
    %1349 = vmatprep.subr.mxu0 0.0
    %1350 = vmatpush1.msra.mxu0 0.0
    %1351 = vmatprep.subr.mxu0 0.0
    %1352 = vmatpush1.msra.mxu0 0.0
    %1353 = vmatprep.subr.mxu0 0.0
    %1354 = vmatpush1.msra.mxu0 0.0
    %1355 = vmatprep.subr.mxu0 0.0
    %1356 = vmatpush1.msra.mxu0 0.0
    %1357 = vmatprep.subr.mxu0 0.0
    %1358 = vmatpush1.msra.mxu0 0.0
    %1359 = vmatprep.subr.mxu0 0.0
    %1360 = vmatpush1.msra.mxu0 0.0
    %1361 = vmatprep.subr.mxu0 0.0
    %1362 = vmatpush1.msra.mxu0 0.0
    %1363 = vmatprep.subr.mxu0 0.0
    %1364 = vmatpush1.msra.mxu0 0.0
    %1365 = vmatprep.subr.mxu0 0.0
    %1366 = vmatpush1.msra.mxu0 0.0
    %1367 = vmatprep.subr.mxu0 0.0
    %1368 = vmatpush1.msra.mxu0 0.0
    %1369 = vmatprep.subr.mxu0 0.0
    %1370 = vmatpush1.msra.mxu0 0.0
    %1371 = vmatprep.mubr.f32.mxu0 0.0
    %v1372 = vand.u32 %v736, 4294901760
    %1373 = vmatmul.mubr.f32.gmra.mrb[0].mxu0 %v1372
    %v1374 = vpop.f32.mrb[0].mxu0
    %v1375 = vadd.f32 %v1288, %v1374
    %v1376 = vpop.f32.mrb[0].mxu0
    %1377 = vdwg.mxu0
    %v1378 = vmul.f32 %v76, %v76
    %1379 = vmatprep.subr.mxu0 0.0
    %v1380 = vand.u32 %v78, 4294901760
    %1381 = vmatpush1.msra.mxu0 %v1380
    %1382 = vmatprep.subr.mxu0 0.0
    %v1383 = vand.u32 %v79, 4294901760
    %1384 = vmatpush1.msra.mxu0 %v1383
    %1385 = vmatprep.subr.mxu0 0.0
    %v1386 = vand.u32 %v80, 4294901760
    %1387 = vmatpush1.msra.mxu0 %v1386
    %1388 = vmatprep.subr.mxu0 0.0
    %v1389 = vand.u32 %v81, 4294901760
    %1390 = vmatpush1.msra.mxu0 %v1389
    %1391 = vmatprep.subr.mxu0 0.0
    %v1392 = vand.u32 %v82, 4294901760
    %1393 = vmatpush1.msra.mxu0 %v1392
    %1394 = vmatprep.subr.mxu0 0.0
    %v1395 = vand.u32 %v83, 4294901760
    %1396 = vmatpush1.msra.mxu0 %v1395
    %1397 = vmatprep.subr.mxu0 0.0
    %v1398 = vand.u32 %v84, 4294901760
    %1399 = vmatpush1.msra.mxu0 %v1398
    %1400 = vmatprep.subr.mxu0 0.0
    %v1401 = vand.u32 %v85, 4294901760
    %1402 = vmatpush1.msra.mxu0 %v1401
    %1403 = vmatprep.subr.mxu0 0.0
    %v1404 = vand.u32 %v86, 4294901760
    %1405 = vmatpush1.msra.mxu0 %v1404
    %1406 = vmatprep.subr.mxu0 0.0
    %v1407 = vand.u32 %v87, 4294901760
    %1408 = vmatpush1.msra.mxu0 %v1407
    %1409 = vmatprep.subr.mxu0 0.0
    %v1410 = vand.u32 %v88, 4294901760
    %1411 = vmatpush1.msra.mxu0 %v1410
    %1412 = vmatprep.subr.mxu0 0.0
    %v1413 = vand.u32 %v89, 4294901760
    %1414 = vmatpush1.msra.mxu0 %v1413
    %1415 = vmatprep.subr.mxu0 0.0
    %v1416 = vand.u32 %v90, 4294901760
    %1417 = vmatpush1.msra.mxu0 %v1416
    %1418 = vmatprep.subr.mxu0 0.0
    %v1419 = vand.u32 %v91, 4294901760
    %1420 = vmatpush1.msra.mxu0 %v1419
    %1421 = vmatprep.subr.mxu0 0.0
    %v1422 = vand.u32 %v92, 4294901760
    %1423 = vmatpush1.msra.mxu0 %v1422
    %1424 = vmatprep.subr.mxu0 0.0
    %v1425 = vand.u32 %v93, 4294901760
    %1426 = vmatpush1.msra.mxu0 %v1425
    %1427 = vmatprep.subr.mxu0 0.0
    %1428 = vmatpush1.msra.mxu0 0.0
    %1429 = vmatprep.subr.mxu0 0.0
    %1430 = vmatpush1.msra.mxu0 0.0
    %1431 = vmatprep.subr.mxu0 0.0
    %1432 = vmatpush1.msra.mxu0 0.0
    %1433 = vmatprep.subr.mxu0 0.0
    %1434 = vmatpush1.msra.mxu0 0.0
    %1435 = vmatprep.subr.mxu0 0.0
    %1436 = vmatpush1.msra.mxu0 0.0
    %1437 = vmatprep.subr.mxu0 0.0
    %1438 = vmatpush1.msra.mxu0 0.0
    %1439 = vmatprep.subr.mxu0 0.0
    %1440 = vmatpush1.msra.mxu0 0.0
    %1441 = vmatprep.subr.mxu0 0.0
    %1442 = vmatpush1.msra.mxu0 0.0
    %1443 = vmatprep.subr.mxu0 0.0
    %1444 = vmatpush1.msra.mxu0 0.0
    %1445 = vmatprep.subr.mxu0 0.0
    %1446 = vmatpush1.msra.mxu0 0.0
    %1447 = vmatprep.subr.mxu0 0.0
    %1448 = vmatpush1.msra.mxu0 0.0
    %1449 = vmatprep.subr.mxu0 0.0
    %1450 = vmatpush1.msra.mxu0 0.0
    %1451 = vmatprep.subr.mxu0 0.0
    %1452 = vmatpush1.msra.mxu0 0.0
    %1453 = vmatprep.subr.mxu0 0.0
    %1454 = vmatpush1.msra.mxu0 0.0
    %1455 = vmatprep.subr.mxu0 0.0
    %1456 = vmatpush1.msra.mxu0 0.0
    %1457 = vmatprep.subr.mxu0 0.0
    %1458 = vmatpush1.msra.mxu0 0.0
    %1459 = vmatprep.mubr.f32.mxu0 0.0
    %v1460 = vand.u32 %v1378, 4294901760
    %v1461 = vsub.f32 %v1378, %v1460
    %v1462 = vand.u32 %v1461, 4294901760
    %v1463 = vsub.f32 %v1461, %v1462
    %v1464 = vand.u32 %v1463, 4294901760
    %1465 = vmatmul.mubr.f32.gmra.mrb[0].mxu0 %v1464
    %v1466 = vpop.f32.mrb[0].mxu0
    %v1467 = vadd.f32 0.0, %v1466
    %v1468 = vpop.f32.mrb[0].mxu0
    %1469 = vdwg.mxu0
    %1470 = vmatprep.subr.mxu0 0.0
    %v1471 = vand.u32 %v78, 4294901760
    %v1472 = vsub.f32 %v78, %v1471
    %v1473 = vand.u32 %v1472, 4294901760
    %v1474 = vsub.f32 %v1472, %v1473
    %v1475 = vand.u32 %v1474, 4294901760
    %1476 = vmatpush1.msra.mxu0 %v1475
    %1477 = vmatprep.subr.mxu0 0.0
    %v1478 = vand.u32 %v79, 4294901760
    %v1479 = vsub.f32 %v79, %v1478
    %v1480 = vand.u32 %v1479, 4294901760
    %v1481 = vsub.f32 %v1479, %v1480
    %v1482 = vand.u32 %v1481, 4294901760
    %1483 = vmatpush1.msra.mxu0 %v1482
    %1484 = vmatprep.subr.mxu0 0.0
    %v1485 = vand.u32 %v80, 4294901760
    %v1486 = vsub.f32 %v80, %v1485
    %v1487 = vand.u32 %v1486, 4294901760
    %v1488 = vsub.f32 %v1486, %v1487
    %v1489 = vand.u32 %v1488, 4294901760
    %1490 = vmatpush1.msra.mxu0 %v1489
    %1491 = vmatprep.subr.mxu0 0.0
    %v1492 = vand.u32 %v81, 4294901760
    %v1493 = vsub.f32 %v81, %v1492
    %v1494 = vand.u32 %v1493, 4294901760
    %v1495 = vsub.f32 %v1493, %v1494
    %v1496 = vand.u32 %v1495, 4294901760
    %1497 = vmatpush1.msra.mxu0 %v1496
    %1498 = vmatprep.subr.mxu0 0.0
    %v1499 = vand.u32 %v82, 4294901760
    %v1500 = vsub.f32 %v82, %v1499
    %v1501 = vand.u32 %v1500, 4294901760
    %v1502 = vsub.f32 %v1500, %v1501
    %v1503 = vand.u32 %v1502, 4294901760
    %1504 = vmatpush1.msra.mxu0 %v1503
    %1505 = vmatprep.subr.mxu0 0.0
    %v1506 = vand.u32 %v83, 4294901760
    %v1507 = vsub.f32 %v83, %v1506
    %v1508 = vand.u32 %v1507, 4294901760
    %v1509 = vsub.f32 %v1507, %v1508
    %v1510 = vand.u32 %v1509, 4294901760
    %1511 = vmatpush1.msra.mxu0 %v1510
    %1512 = vmatprep.subr.mxu0 0.0
    %v1513 = vand.u32 %v84, 4294901760
    %v1514 = vsub.f32 %v84, %v1513
    %v1515 = vand.u32 %v1514, 4294901760
    %v1516 = vsub.f32 %v1514, %v1515
    %v1517 = vand.u32 %v1516, 4294901760
    %1518 = vmatpush1.msra.mxu0 %v1517
    %1519 = vmatprep.subr.mxu0 0.0
    %v1520 = vand.u32 %v85, 4294901760
    %v1521 = vsub.f32 %v85, %v1520
    %v1522 = vand.u32 %v1521, 4294901760
    %v1523 = vsub.f32 %v1521, %v1522
    %v1524 = vand.u32 %v1523, 4294901760
    %1525 = vmatpush1.msra.mxu0 %v1524
    %1526 = vmatprep.subr.mxu0 0.0
    %v1527 = vand.u32 %v86, 4294901760
    %v1528 = vsub.f32 %v86, %v1527
    %v1529 = vand.u32 %v1528, 4294901760
    %v1530 = vsub.f32 %v1528, %v1529
    %v1531 = vand.u32 %v1530, 4294901760
    %1532 = vmatpush1.msra.mxu0 %v1531
    %1533 = vmatprep.subr.mxu0 0.0
    %v1534 = vand.u32 %v87, 4294901760
    %v1535 = vsub.f32 %v87, %v1534
    %v1536 = vand.u32 %v1535, 4294901760
    %v1537 = vsub.f32 %v1535, %v1536
    %v1538 = vand.u32 %v1537, 4294901760
    %1539 = vmatpush1.msra.mxu0 %v1538
    %1540 = vmatprep.subr.mxu0 0.0
    %v1541 = vand.u32 %v88, 4294901760
    %v1542 = vsub.f32 %v88, %v1541
    %v1543 = vand.u32 %v1542, 4294901760
    %v1544 = vsub.f32 %v1542, %v1543
    %v1545 = vand.u32 %v1544, 4294901760
    %1546 = vmatpush1.msra.mxu0 %v1545
    %1547 = vmatprep.subr.mxu0 0.0
    %v1548 = vand.u32 %v89, 4294901760
    %v1549 = vsub.f32 %v89, %v1548
    %v1550 = vand.u32 %v1549, 4294901760
    %v1551 = vsub.f32 %v1549, %v1550
    %v1552 = vand.u32 %v1551, 4294901760
    %1553 = vmatpush1.msra.mxu0 %v1552
    %1554 = vmatprep.subr.mxu0 0.0
    %v1555 = vand.u32 %v90, 4294901760
    %v1556 = vsub.f32 %v90, %v1555
    %v1557 = vand.u32 %v1556, 4294901760
    %v1558 = vsub.f32 %v1556, %v1557
    %v1559 = vand.u32 %v1558, 4294901760
    %1560 = vmatpush1.msra.mxu0 %v1559
    %1561 = vmatprep.subr.mxu0 0.0
    %v1562 = vand.u32 %v91, 4294901760
    %v1563 = vsub.f32 %v91, %v1562
    %v1564 = vand.u32 %v1563, 4294901760
    %v1565 = vsub.f32 %v1563, %v1564
    %v1566 = vand.u32 %v1565, 4294901760
    %1567 = vmatpush1.msra.mxu0 %v1566
    %1568 = vmatprep.subr.mxu0 0.0
    %v1569 = vand.u32 %v92, 4294901760
    %v1570 = vsub.f32 %v92, %v1569
    %v1571 = vand.u32 %v1570, 4294901760
    %v1572 = vsub.f32 %v1570, %v1571
    %v1573 = vand.u32 %v1572, 4294901760
    %1574 = vmatpush1.msra.mxu0 %v1573
    %1575 = vmatprep.subr.mxu0 0.0
    %v1576 = vand.u32 %v93, 4294901760
    %v1577 = vsub.f32 %v93, %v1576
    %v1578 = vand.u32 %v1577, 4294901760
    %v1579 = vsub.f32 %v1577, %v1578
    %v1580 = vand.u32 %v1579, 4294901760
    %1581 = vmatpush1.msra.mxu0 %v1580
    %1582 = vmatprep.subr.mxu0 0.0
    %1583 = vmatpush1.msra.mxu0 0.0
    %1584 = vmatprep.subr.mxu0 0.0
    %1585 = vmatpush1.msra.mxu0 0.0
    %1586 = vmatprep.subr.mxu0 0.0
    %1587 = vmatpush1.msra.mxu0 0.0
    %1588 = vmatprep.subr.mxu0 0.0
    %1589 = vmatpush1.msra.mxu0 0.0
    %1590 = vmatprep.subr.mxu0 0.0
    %1591 = vmatpush1.msra.mxu0 0.0
    %1592 = vmatprep.subr.mxu0 0.0
    %1593 = vmatpush1.msra.mxu0 0.0
    %1594 = vmatprep.subr.mxu0 0.0
    %1595 = vmatpush1.msra.mxu0 0.0
    %1596 = vmatprep.subr.mxu0 0.0
    %1597 = vmatpush1.msra.mxu0 0.0
    %1598 = vmatprep.subr.mxu0 0.0
    %1599 = vmatpush1.msra.mxu0 0.0
    %1600 = vmatprep.subr.mxu0 0.0
    %1601 = vmatpush1.msra.mxu0 0.0
    %1602 = vmatprep.subr.mxu0 0.0
    %1603 = vmatpush1.msra.mxu0 0.0
    %1604 = vmatprep.subr.mxu0 0.0
    %1605 = vmatpush1.msra.mxu0 0.0
    %1606 = vmatprep.subr.mxu0 0.0
    %1607 = vmatpush1.msra.mxu0 0.0
    %1608 = vmatprep.subr.mxu0 0.0
    %1609 = vmatpush1.msra.mxu0 0.0
    %1610 = vmatprep.subr.mxu0 0.0
    %1611 = vmatpush1.msra.mxu0 0.0
    %1612 = vmatprep.subr.mxu0 0.0
    %1613 = vmatpush1.msra.mxu0 0.0
    %1614 = vmatprep.mubr.f32.mxu0 0.0
    %v1615 = vand.u32 %v1378, 4294901760
    %1616 = vmatmul.mubr.f32.gmra.mrb[0].mxu0 %v1615
    %v1617 = vpop.f32.mrb[0].mxu0
    %v1618 = vadd.f32 %v1467, %v1617
    %v1619 = vpop.f32.mrb[0].mxu0
    %1620 = vdwg.mxu0
    %1621 = vmatprep.subr.mxu0 0.0
    %v1622 = vand.u32 %v78, 4294901760
    %v1623 = vsub.f32 %v78, %v1622
    %1624 = vmatpush1.msra.mxu0 %v1623
    %1625 = vmatprep.subr.mxu0 0.0
    %v1626 = vand.u32 %v79, 4294901760
    %v1627 = vsub.f32 %v79, %v1626
    %1628 = vmatpush1.msra.mxu0 %v1627
    %1629 = vmatprep.subr.mxu0 0.0
    %v1630 = vand.u32 %v80, 4294901760
    %v1631 = vsub.f32 %v80, %v1630
    %1632 = vmatpush1.msra.mxu0 %v1631
    %1633 = vmatprep.subr.mxu0 0.0
    %v1634 = vand.u32 %v81, 4294901760
    %v1635 = vsub.f32 %v81, %v1634
    %1636 = vmatpush1.msra.mxu0 %v1635
    %1637 = vmatprep.subr.mxu0 0.0
    %v1638 = vand.u32 %v82, 4294901760
    %v1639 = vsub.f32 %v82, %v1638
    %1640 = vmatpush1.msra.mxu0 %v1639
    %1641 = vmatprep.subr.mxu0 0.0
    %v1642 = vand.u32 %v83, 4294901760
    %v1643 = vsub.f32 %v83, %v1642
    %1644 = vmatpush1.msra.mxu0 %v1643
    %1645 = vmatprep.subr.mxu0 0.0
    %v1646 = vand.u32 %v84, 4294901760
    %v1647 = vsub.f32 %v84, %v1646
    %1648 = vmatpush1.msra.mxu0 %v1647
    %1649 = vmatprep.subr.mxu0 0.0
    %v1650 = vand.u32 %v85, 4294901760
    %v1651 = vsub.f32 %v85, %v1650
    %1652 = vmatpush1.msra.mxu0 %v1651
    %1653 = vmatprep.subr.mxu0 0.0
    %v1654 = vand.u32 %v86, 4294901760
    %v1655 = vsub.f32 %v86, %v1654
    %1656 = vmatpush1.msra.mxu0 %v1655
    %1657 = vmatprep.subr.mxu0 0.0
    %v1658 = vand.u32 %v87, 4294901760
    %v1659 = vsub.f32 %v87, %v1658
    %1660 = vmatpush1.msra.mxu0 %v1659
    %1661 = vmatprep.subr.mxu0 0.0
    %v1662 = vand.u32 %v88, 4294901760
    %v1663 = vsub.f32 %v88, %v1662
    %1664 = vmatpush1.msra.mxu0 %v1663
    %1665 = vmatprep.subr.mxu0 0.0
    %v1666 = vand.u32 %v89, 4294901760
    %v1667 = vsub.f32 %v89, %v1666
    %1668 = vmatpush1.msra.mxu0 %v1667
    %1669 = vmatprep.subr.mxu0 0.0
    %v1670 = vand.u32 %v90, 4294901760
    %v1671 = vsub.f32 %v90, %v1670
    %1672 = vmatpush1.msra.mxu0 %v1671
    %1673 = vmatprep.subr.mxu0 0.0
    %v1674 = vand.u32 %v91, 4294901760
    %v1675 = vsub.f32 %v91, %v1674
    %1676 = vmatpush1.msra.mxu0 %v1675
    %1677 = vmatprep.subr.mxu0 0.0
    %v1678 = vand.u32 %v92, 4294901760
    %v1679 = vsub.f32 %v92, %v1678
    %1680 = vmatpush1.msra.mxu0 %v1679
    %1681 = vmatprep.subr.mxu0 0.0
    %v1682 = vand.u32 %v93, 4294901760
    %v1683 = vsub.f32 %v93, %v1682
    %1684 = vmatpush1.msra.mxu0 %v1683
    %1685 = vmatprep.subr.mxu0 0.0
    %1686 = vmatpush1.msra.mxu0 0.0
    %1687 = vmatprep.subr.mxu0 0.0
    %1688 = vmatpush1.msra.mxu0 0.0
    %1689 = vmatprep.subr.mxu0 0.0
    %1690 = vmatpush1.msra.mxu0 0.0
    %1691 = vmatprep.subr.mxu0 0.0
    %1692 = vmatpush1.msra.mxu0 0.0
    %1693 = vmatprep.subr.mxu0 0.0
    %1694 = vmatpush1.msra.mxu0 0.0
    %1695 = vmatprep.subr.mxu0 0.0
    %1696 = vmatpush1.msra.mxu0 0.0
    %1697 = vmatprep.subr.mxu0 0.0
    %1698 = vmatpush1.msra.mxu0 0.0
    %1699 = vmatprep.subr.mxu0 0.0
    %1700 = vmatpush1.msra.mxu0 0.0
    %1701 = vmatprep.subr.mxu0 0.0
    %1702 = vmatpush1.msra.mxu0 0.0
    %1703 = vmatprep.subr.mxu0 0.0
    %1704 = vmatpush1.msra.mxu0 0.0
    %1705 = vmatprep.subr.mxu0 0.0
    %1706 = vmatpush1.msra.mxu0 0.0
    %1707 = vmatprep.subr.mxu0 0.0
    %1708 = vmatpush1.msra.mxu0 0.0
    %1709 = vmatprep.subr.mxu0 0.0
    %1710 = vmatpush1.msra.mxu0 0.0
    %1711 = vmatprep.subr.mxu0 0.0
    %1712 = vmatpush1.msra.mxu0 0.0
    %1713 = vmatprep.subr.mxu0 0.0
    %1714 = vmatpush1.msra.mxu0 0.0
    %1715 = vmatprep.subr.mxu0 0.0
    %1716 = vmatpush1.msra.mxu0 0.0
    %1717 = vmatprep.mubr.f32.mxu0 0.0
    %v1718 = vand.u32 %v1378, 4294901760
    %v1719 = vsub.f32 %v1378, %v1718
    %1720 = vmatmul.mubr.f32.gmra.mrb[0].mxu0 %v1719
    %v1721 = vpop.f32.mrb[0].mxu0
    %v1722 = vadd.f32 %v1618, %v1721
    %v1723 = vpop.f32.mrb[0].mxu0
    %1724 = vdwg.mxu0
    %1725 = vmatprep.subr.mxu0 0.0
    %v1726 = vand.u32 %v78, 4294901760
    %1727 = vmatpush1.msra.mxu0 %v1726
    %1728 = vmatprep.subr.mxu0 0.0
    %v1729 = vand.u32 %v79, 4294901760
    %1730 = vmatpush1.msra.mxu0 %v1729
    %1731 = vmatprep.subr.mxu0 0.0
    %v1732 = vand.u32 %v80, 4294901760
    %1733 = vmatpush1.msra.mxu0 %v1732
    %1734 = vmatprep.subr.mxu0 0.0
    %v1735 = vand.u32 %v81, 4294901760
    %1736 = vmatpush1.msra.mxu0 %v1735
    %1737 = vmatprep.subr.mxu0 0.0
    %v1738 = vand.u32 %v82, 4294901760
    %1739 = vmatpush1.msra.mxu0 %v1738
    %1740 = vmatprep.subr.mxu0 0.0
    %v1741 = vand.u32 %v83, 4294901760
    %1742 = vmatpush1.msra.mxu0 %v1741
    %1743 = vmatprep.subr.mxu0 0.0
    %v1744 = vand.u32 %v84, 4294901760
    %1745 = vmatpush1.msra.mxu0 %v1744
    %1746 = vmatprep.subr.mxu0 0.0
    %v1747 = vand.u32 %v85, 4294901760
    %1748 = vmatpush1.msra.mxu0 %v1747
    %1749 = vmatprep.subr.mxu0 0.0
    %v1750 = vand.u32 %v86, 4294901760
    %1751 = vmatpush1.msra.mxu0 %v1750
    %1752 = vmatprep.subr.mxu0 0.0
    %v1753 = vand.u32 %v87, 4294901760
    %1754 = vmatpush1.msra.mxu0 %v1753
    %1755 = vmatprep.subr.mxu0 0.0
    %v1756 = vand.u32 %v88, 4294901760
    %1757 = vmatpush1.msra.mxu0 %v1756
    %1758 = vmatprep.subr.mxu0 0.0
    %v1759 = vand.u32 %v89, 4294901760
    %1760 = vmatpush1.msra.mxu0 %v1759
    %1761 = vmatprep.subr.mxu0 0.0
    %v1762 = vand.u32 %v90, 4294901760
    %1763 = vmatpush1.msra.mxu0 %v1762
    %1764 = vmatprep.subr.mxu0 0.0
    %v1765 = vand.u32 %v91, 4294901760
    %1766 = vmatpush1.msra.mxu0 %v1765
    %1767 = vmatprep.subr.mxu0 0.0
    %v1768 = vand.u32 %v92, 4294901760
    %1769 = vmatpush1.msra.mxu0 %v1768
    %1770 = vmatprep.subr.mxu0 0.0
    %v1771 = vand.u32 %v93, 4294901760
    %1772 = vmatpush1.msra.mxu0 %v1771
    %1773 = vmatprep.subr.mxu0 0.0
    %1774 = vmatpush1.msra.mxu0 0.0
    %1775 = vmatprep.subr.mxu0 0.0
    %1776 = vmatpush1.msra.mxu0 0.0
    %1777 = vmatprep.subr.mxu0 0.0
    %1778 = vmatpush1.msra.mxu0 0.0
    %1779 = vmatprep.subr.mxu0 0.0
    %1780 = vmatpush1.msra.mxu0 0.0
    %1781 = vmatprep.subr.mxu0 0.0
    %1782 = vmatpush1.msra.mxu0 0.0
    %1783 = vmatprep.subr.mxu0 0.0
    %1784 = vmatpush1.msra.mxu0 0.0
    %1785 = vmatprep.subr.mxu0 0.0
    %1786 = vmatpush1.msra.mxu0 0.0
    %1787 = vmatprep.subr.mxu0 0.0
    %1788 = vmatpush1.msra.mxu0 0.0
    %1789 = vmatprep.subr.mxu0 0.0
    %1790 = vmatpush1.msra.mxu0 0.0
    %1791 = vmatprep.subr.mxu0 0.0
    %1792 = vmatpush1.msra.mxu0 0.0
    %1793 = vmatprep.subr.mxu0 0.0
    %1794 = vmatpush1.msra.mxu0 0.0
    %1795 = vmatprep.subr.mxu0 0.0
    %1796 = vmatpush1.msra.mxu0 0.0
    %1797 = vmatprep.subr.mxu0 0.0
    %1798 = vmatpush1.msra.mxu0 0.0
    %1799 = vmatprep.subr.mxu0 0.0
    %1800 = vmatpush1.msra.mxu0 0.0
    %1801 = vmatprep.subr.mxu0 0.0
    %1802 = vmatpush1.msra.mxu0 0.0
    %1803 = vmatprep.subr.mxu0 0.0
    %1804 = vmatpush1.msra.mxu0 0.0
    %1805 = vmatprep.mubr.f32.mxu0 0.0
    %v1806 = vand.u32 %v1378, 4294901760
    %v1807 = vsub.f32 %v1378, %v1806
    %v1808 = vand.u32 %v1807, 4294901760
    %1809 = vmatmul.mubr.f32.gmra.mrb[0].mxu0 %v1808
    %v1810 = vpop.f32.mrb[0].mxu0
    %v1811 = vadd.f32 %v1722, %v1810
    %v1812 = vpop.f32.mrb[0].mxu0
    %1813 = vdwg.mxu0
    %1814 = vmatprep.subr.mxu0 0.0
    %v1815 = vand.u32 %v78, 4294901760
    %v1816 = vsub.f32 %v78, %v1815
    %v1817 = vand.u32 %v1816, 4294901760
    %1818 = vmatpush1.msra.mxu0 %v1817
    %1819 = vmatprep.subr.mxu0 0.0
    %v1820 = vand.u32 %v79, 4294901760
    %v1821 = vsub.f32 %v79, %v1820
    %v1822 = vand.u32 %v1821, 4294901760
    %1823 = vmatpush1.msra.mxu0 %v1822
    %1824 = vmatprep.subr.mxu0 0.0
    %v1825 = vand.u32 %v80, 4294901760
    %v1826 = vsub.f32 %v80, %v1825
    %v1827 = vand.u32 %v1826, 4294901760
    %1828 = vmatpush1.msra.mxu0 %v1827
    %1829 = vmatprep.subr.mxu0 0.0
    %v1830 = vand.u32 %v81, 4294901760
    %v1831 = vsub.f32 %v81, %v1830
    %v1832 = vand.u32 %v1831, 4294901760
    %1833 = vmatpush1.msra.mxu0 %v1832
    %1834 = vmatprep.subr.mxu0 0.0
    %v1835 = vand.u32 %v82, 4294901760
    %v1836 = vsub.f32 %v82, %v1835
    %v1837 = vand.u32 %v1836, 4294901760
    %1838 = vmatpush1.msra.mxu0 %v1837
    %1839 = vmatprep.subr.mxu0 0.0
    %v1840 = vand.u32 %v83, 4294901760
    %v1841 = vsub.f32 %v83, %v1840
    %v1842 = vand.u32 %v1841, 4294901760
    %1843 = vmatpush1.msra.mxu0 %v1842
    %1844 = vmatprep.subr.mxu0 0.0
    %v1845 = vand.u32 %v84, 4294901760
    %v1846 = vsub.f32 %v84, %v1845
    %v1847 = vand.u32 %v1846, 4294901760
    %1848 = vmatpush1.msra.mxu0 %v1847
    %1849 = vmatprep.subr.mxu0 0.0
    %v1850 = vand.u32 %v85, 4294901760
    %v1851 = vsub.f32 %v85, %v1850
    %v1852 = vand.u32 %v1851, 4294901760
    %1853 = vmatpush1.msra.mxu0 %v1852
    %1854 = vmatprep.subr.mxu0 0.0
    %v1855 = vand.u32 %v86, 4294901760
    %v1856 = vsub.f32 %v86, %v1855
    %v1857 = vand.u32 %v1856, 4294901760
    %1858 = vmatpush1.msra.mxu0 %v1857
    %1859 = vmatprep.subr.mxu0 0.0
    %v1860 = vand.u32 %v87, 4294901760
    %v1861 = vsub.f32 %v87, %v1860
    %v1862 = vand.u32 %v1861, 4294901760
    %1863 = vmatpush1.msra.mxu0 %v1862
    %1864 = vmatprep.subr.mxu0 0.0
    %v1865 = vand.u32 %v88, 4294901760
    %v1866 = vsub.f32 %v88, %v1865
    %v1867 = vand.u32 %v1866, 4294901760
    %1868 = vmatpush1.msra.mxu0 %v1867
    %1869 = vmatprep.subr.mxu0 0.0
    %v1870 = vand.u32 %v89, 4294901760
    %v1871 = vsub.f32 %v89, %v1870
    %v1872 = vand.u32 %v1871, 4294901760
    %1873 = vmatpush1.msra.mxu0 %v1872
    %1874 = vmatprep.subr.mxu0 0.0
    %v1875 = vand.u32 %v90, 4294901760
    %v1876 = vsub.f32 %v90, %v1875
    %v1877 = vand.u32 %v1876, 4294901760
    %1878 = vmatpush1.msra.mxu0 %v1877
    %1879 = vmatprep.subr.mxu0 0.0
    %v1880 = vand.u32 %v91, 4294901760
    %v1881 = vsub.f32 %v91, %v1880
    %v1882 = vand.u32 %v1881, 4294901760
    %1883 = vmatpush1.msra.mxu0 %v1882
    %1884 = vmatprep.subr.mxu0 0.0
    %v1885 = vand.u32 %v92, 4294901760
    %v1886 = vsub.f32 %v92, %v1885
    %v1887 = vand.u32 %v1886, 4294901760
    %1888 = vmatpush1.msra.mxu0 %v1887
    %1889 = vmatprep.subr.mxu0 0.0
    %v1890 = vand.u32 %v93, 4294901760
    %v1891 = vsub.f32 %v93, %v1890
    %v1892 = vand.u32 %v1891, 4294901760
    %1893 = vmatpush1.msra.mxu0 %v1892
    %1894 = vmatprep.subr.mxu0 0.0
    %1895 = vmatpush1.msra.mxu0 0.0
    %1896 = vmatprep.subr.mxu0 0.0
    %1897 = vmatpush1.msra.mxu0 0.0
    %1898 = vmatprep.subr.mxu0 0.0
    %1899 = vmatpush1.msra.mxu0 0.0
    %1900 = vmatprep.subr.mxu0 0.0
    %1901 = vmatpush1.msra.mxu0 0.0
    %1902 = vmatprep.subr.mxu0 0.0
    %1903 = vmatpush1.msra.mxu0 0.0
    %1904 = vmatprep.subr.mxu0 0.0
    %1905 = vmatpush1.msra.mxu0 0.0
    %1906 = vmatprep.subr.mxu0 0.0
    %1907 = vmatpush1.msra.mxu0 0.0
    %1908 = vmatprep.subr.mxu0 0.0
    %1909 = vmatpush1.msra.mxu0 0.0
    %1910 = vmatprep.subr.mxu0 0.0
    %1911 = vmatpush1.msra.mxu0 0.0
    %1912 = vmatprep.subr.mxu0 0.0
    %1913 = vmatpush1.msra.mxu0 0.0
    %1914 = vmatprep.subr.mxu0 0.0
    %1915 = vmatpush1.msra.mxu0 0.0
    %1916 = vmatprep.subr.mxu0 0.0
    %1917 = vmatpush1.msra.mxu0 0.0
    %1918 = vmatprep.subr.mxu0 0.0
    %1919 = vmatpush1.msra.mxu0 0.0
    %1920 = vmatprep.subr.mxu0 0.0
    %1921 = vmatpush1.msra.mxu0 0.0
    %1922 = vmatprep.subr.mxu0 0.0
    %1923 = vmatpush1.msra.mxu0 0.0
    %1924 = vmatprep.subr.mxu0 0.0
    %1925 = vmatpush1.msra.mxu0 0.0
    %1926 = vmatprep.mubr.f32.mxu0 0.0
    %v1927 = vand.u32 %v1378, 4294901760
    %1928 = vmatmul.mubr.f32.gmra.mrb[0].mxu0 %v1927
    %v1929 = vpop.f32.mrb[0].mxu0
    %v1930 = vadd.f32 %v1811, %v1929
    %v1931 = vpop.f32.mrb[0].mxu0
    %1932 = vdwg.mxu0
    %1933 = vmatprep.subr.mxu0 0.0
    %v1934 = vand.u32 %v78, 4294901760
    %1935 = vmatpush1.msra.mxu0 %v1934
    %1936 = vmatprep.subr.mxu0 0.0
    %v1937 = vand.u32 %v79, 4294901760
    %1938 = vmatpush1.msra.mxu0 %v1937
    %1939 = vmatprep.subr.mxu0 0.0
    %v1940 = vand.u32 %v80, 4294901760
    %1941 = vmatpush1.msra.mxu0 %v1940
    %1942 = vmatprep.subr.mxu0 0.0
    %v1943 = vand.u32 %v81, 4294901760
    %1944 = vmatpush1.msra.mxu0 %v1943
    %1945 = vmatprep.subr.mxu0 0.0
    %v1946 = vand.u32 %v82, 4294901760
    %1947 = vmatpush1.msra.mxu0 %v1946
    %1948 = vmatprep.subr.mxu0 0.0
    %v1949 = vand.u32 %v83, 4294901760
    %1950 = vmatpush1.msra.mxu0 %v1949
    %1951 = vmatprep.subr.mxu0 0.0
    %v1952 = vand.u32 %v84, 4294901760
    %1953 = vmatpush1.msra.mxu0 %v1952
    %1954 = vmatprep.subr.mxu0 0.0
    %v1955 = vand.u32 %v85, 4294901760
    %1956 = vmatpush1.msra.mxu0 %v1955
    %1957 = vmatprep.subr.mxu0 0.0
    %v1958 = vand.u32 %v86, 4294901760
    %1959 = vmatpush1.msra.mxu0 %v1958
    %1960 = vmatprep.subr.mxu0 0.0
    %v1961 = vand.u32 %v87, 4294901760
    %1962 = vmatpush1.msra.mxu0 %v1961
    %1963 = vmatprep.subr.mxu0 0.0
    %v1964 = vand.u32 %v88, 4294901760
    %1965 = vmatpush1.msra.mxu0 %v1964
    %1966 = vmatprep.subr.mxu0 0.0
    %v1967 = vand.u32 %v89, 4294901760
    %1968 = vmatpush1.msra.mxu0 %v1967
    %1969 = vmatprep.subr.mxu0 0.0
    %v1970 = vand.u32 %v90, 4294901760
    %1971 = vmatpush1.msra.mxu0 %v1970
    %1972 = vmatprep.subr.mxu0 0.0
    %v1973 = vand.u32 %v91, 4294901760
    %1974 = vmatpush1.msra.mxu0 %v1973
    %1975 = vmatprep.subr.mxu0 0.0
    %v1976 = vand.u32 %v92, 4294901760
    %1977 = vmatpush1.msra.mxu0 %v1976
    %1978 = vmatprep.subr.mxu0 0.0
    %v1979 = vand.u32 %v93, 4294901760
    %1980 = vmatpush1.msra.mxu0 %v1979
    %1981 = vmatprep.subr.mxu0 0.0
    %1982 = vmatpush1.msra.mxu0 0.0
    %1983 = vmatprep.subr.mxu0 0.0
    %1984 = vmatpush1.msra.mxu0 0.0
    %1985 = vmatprep.subr.mxu0 0.0
    %1986 = vmatpush1.msra.mxu0 0.0
    %1987 = vmatprep.subr.mxu0 0.0
    %1988 = vmatpush1.msra.mxu0 0.0
    %1989 = vmatprep.subr.mxu0 0.0
    %1990 = vmatpush1.msra.mxu0 0.0
    %1991 = vmatprep.subr.mxu0 0.0
    %1992 = vmatpush1.msra.mxu0 0.0
    %1993 = vmatprep.subr.mxu0 0.0
    %1994 = vmatpush1.msra.mxu0 0.0
    %1995 = vmatprep.subr.mxu0 0.0
    %1996 = vmatpush1.msra.mxu0 0.0
    %1997 = vmatprep.subr.mxu0 0.0
    %1998 = vmatpush1.msra.mxu0 0.0
    %1999 = vmatprep.subr.mxu0 0.0
    %2000 = vmatpush1.msra.mxu0 0.0
    %2001 = vmatprep.subr.mxu0 0.0
    %2002 = vmatpush1.msra.mxu0 0.0
    %2003 = vmatprep.subr.mxu0 0.0
    %2004 = vmatpush1.msra.mxu0 0.0
    %2005 = vmatprep.subr.mxu0 0.0
    %2006 = vmatpush1.msra.mxu0 0.0
    %2007 = vmatprep.subr.mxu0 0.0
    %2008 = vmatpush1.msra.mxu0 0.0
    %2009 = vmatprep.subr.mxu0 0.0
    %2010 = vmatpush1.msra.mxu0 0.0
    %2011 = vmatprep.subr.mxu0 0.0
    %2012 = vmatpush1.msra.mxu0 0.0
    %2013 = vmatprep.mubr.f32.mxu0 0.0
    %v2014 = vand.u32 %v1378, 4294901760
    %2015 = vmatmul.mubr.f32.gmra.mrb[0].mxu0 %v2014
    %v2016 = vpop.f32.mrb[0].mxu0
    %v2017 = vadd.f32 %v1930, %v2016
    %v2018 = vpop.f32.mrb[0].mxu0
    %2019 = vdwg.mxu0
    %v2020 = vrsqrt.pop %v733
    %v2021 = vmul.f32 %v733, %v2020
    %vm2022 = vcmp.eq.f32.partialorder %v733, inf
    %v2023 = vsel %vm2022, %v733, %v2021
    %vm2024 = vcmp.eq.f32.partialorder %v733, 0.0
    %v2025 = vand.u32 %v733, 2147483648
    %v2026 = vsel %vm2024, %v2025, %v2023
    %v2027 = vrsqrt.pop %v1375
    %v2028 = vmul.f32 %v1375, %v2027
    %vm2029 = vcmp.eq.f32.partialorder %v1375, inf
    %v2030 = vsel %vm2029, %v1375, %v2028
    %vm2031 = vcmp.eq.f32.partialorder %v1375, 0.0
    %v2032 = vand.u32 %v1375, 2147483648
    %v2033 = vsel %vm2031, %v2032, %v2030
    %v2034 = vrsqrt.pop %v2017
    %v2035 = vmul.f32 %v2017, %v2034
    %vm2036 = vcmp.eq.f32.partialorder %v2017, inf
    %v2037 = vsel %vm2036, %v2017, %v2035
    %vm2038 = vcmp.eq.f32.partialorder %v2017, 0.0
    %v2039 = vand.u32 %v2017, 2147483648
    %v2040 = vsel %vm2038, %v2039, %v2037
    %v2041 = vadd.f32 %v2033, %v2040
    %v2042 = vrcp.pop %v2041
    %v2043 = vmul.f32 %v2026, %v2042
    %v2044 = vld [vmem:[%s55] sm:$0xff]
    %v2045 = vsub.f32 %v2044, %v2043
    %v2046 = vand.u32 2147483647, %v2045
    %v2047 = vld [vmem:[#allocation2] sm:$0x1]
    %vm2048 = vcmask 31744
    %v2049 = vsel %vm2048, %v2046, 0.0
    %v2050 = vrot.slane %v2049, 4
    %v2051 = vadd.f32 %v2049, %v2050
    %v2052 = vrot.slane %v2051, 2
    %v2053 = vadd.f32 %v2051, %v2052
    %v2054 = vrot.slane %v2053, 1
    %v2055 = vadd.f32 %v2053, %v2054
    %v2056 = vadd.f32 %v2047, %v2055
    %vm2057 = vcmask 24576
    %2058 = vst.msk [vmem:[#allocation2] sm:$0x1] %vm2057, %v2056
    // Predicated region
    $region22: #{tpu_custom_call.1} parent=1 // pred_check
      %p2059 = pneg %p69
    $region23: #{tpu_custom_call.1} parent=1 // pred_check_branch
      %2061 = sbr.rel (%p2059) target = $region25
    $region24: #{tpu_custom_call.1} parent=1 // pred_region
      %v2062 = vld [vmem:[#allocation2] sm:$0x1]
      %v2063 = vsel %vm2057, %v2062, 0.0
      %2064 = vadd.xlane.f32.xlu0 %v2063
      %v2065 = vpop.xlane.xlu0 %2064
      %v2066 = vrot.slane %v2065, 4
      %v2067 = vadd.f32 %v2065, %v2066
      %v2068 = vrot.slane %v2067, 2
      %v2069 = vadd.f32 %v2067, %v2068
      %v2070 = vrot.slane %v2069, 1
      %v2071 = vadd.f32 %v2069, %v2070
      %s2072 = vtos %v2071
      %v2073 = vstv %s2072
      %2074 = vst [vmem:[#allocation3] sm:$0xff] %v2073
    $region25: #{tpu_custom_call.1} parent=1 // pred_fallthru
      _
    // Predicated region
    $region26: #{tpu_custom_call.1} parent=1 // pred_check
      _
    $region27: #{tpu_custom_call.1} parent=1 // pred_check_branch
      %2076 = sbr.rel (0) target = $region29
    $region28: #{tpu_custom_call.1} parent=1 // pred_region
      %s2078 = ssub.s32 128, 128
      %2079 = vsyncadd [#allocation4], %s2078
      %s2081 = sshll.u32 [#allocation3], 4
      %s2082 = int_to_ptr.vmem [resolvable:$true] %s2081
      %2084 = dma.vmem_to_hbm [thread:$0]  %s2082, 128, %s4, [#allocation4]
    $region29: #{tpu_custom_call.1} parent=1 // pred_fallthru
      _
    // Predicated region
    $region30: #{tpu_custom_call.1} parent=1 // pred_check
      _
    $region31: #{tpu_custom_call.1} parent=1 // pred_check_branch
      %2086 = sbr.rel (0) target = $region33
    $region32: #{tpu_custom_call.1} parent=1 // pred_region
      %2087 = dma.done [#allocation4], 128
    $region33: #{tpu_custom_call.1} parent=1 // pred_fallthru
      _
    %2088 = vsyncpa [#allocation4], 1

</llo_original>
